<compile_context>
chip_gen: v7x
topology: tpu7x:2x2x1
jax: 0.10.0
libtpu: 0.0.40
codegen_flags: <defaults>
</compile_context>

<pallas_src>
import functools

import jax
import jax.numpy as jnp
from jax import lax
from jax.experimental import pallas as pl
from jax.experimental.pallas import tpu as pltpu

# PyTorch gate order is (i, f, g, o); we pack column blocks as (i, f, o, g) so the
# three sigmoid gates are one contiguous lane-aligned slab.
_GATE_ORDER = (0, 1, 3, 2)


def _round_up(x, m):
    return ((x + m - 1) // m) * m


def _lstm_kernel(x_ref, wih_ref, whh_ref, b_ref, wout_ref, bout_ref,
                 out_ref, gx_ref, *, time_unroll):
    """One grid instance = one batch tile; the full time recurrence runs in-kernel.

    x_ref    : (L, TN, D_pad)        input chunk for this batch tile (time-major)
    wih_ref  : (D_pad, 4*H_pad)      input->gates weight, gate blocks (i,f,o,g)
    whh_ref  : (H_pad, 4*H_pad)      hidden->gates weight, gate blocks (i,f,o,g)
    b_ref    : (1, 4*H_pad)          b_ih + b_hh, gate blocks (i,f,o,g)
    wout_ref : (H_pad, O_pad)        Linear head weight (transposed, padded)
    bout_ref : (1, O_pad)            Linear head bias
    out_ref  : (TN, O_pad)           head(h_n) for this batch tile
    gx_ref   : VMEM (L, TN, 4*H_pad) scratch for precomputed input projections
    """
    L, TN, D = x_ref.shape
    H = whh_ref.shape[0]  # padded hidden size (multiple of 128)

    # ---- (1) Batched input projection for all timesteps: one big MXU matmul. ----
    # Bias folded in once here (not re-broadcast each step on the serial path).
    x_all = x_ref[...].reshape(L * TN, D)          # free merge: TN%8==0, D%128==0
    gx = (jnp.dot(x_all, wih_ref[...], preferred_element_type=jnp.float32)
          + b_ref[...])
    gx_ref[...] = gx.reshape(L, TN, 4 * H).astype(gx_ref.dtype)

    # ---- (2) Serial recurrence: exactly one small matmul per step. -------------
    def step(t, carry):
        h, c = carry
        gates = gx_ref[t].astype(jnp.float32) + jnp.dot(
            h.astype(whh_ref.dtype), whh_ref[...],
            preferred_element_type=jnp.float32)
        # Gate blocks are (i, f, o, g): one fused sigmoid over 3*H lanes + one tanh.
        sig = jax.nn.sigmoid(gates[:, :3 * H])
        i_g = sig[:, 0 * H:1 * H]
        f_g = sig[:, 1 * H:2 * H]
        o_g = sig[:, 2 * H:3 * H]
        g_g = jnp.tanh(gates[:, 3 * H:4 * H])
        c_new = f_g * c + i_g * g_g
        h_new = o_g * jnp.tanh(c_new)
        return h_new, c_new

    h0 = jnp.zeros((TN, H), jnp.float32)
    c0 = jnp.zeros((TN, H), jnp.float32)
    h_n, _ = lax.fori_loop(0, L, step, (h0, c0), unroll=time_unroll)

    # ---- (3) Linear head on the final hidden state (single lane-dense store). --
    out_ref[...] = (jnp.dot(h_n.astype(wout_ref.dtype), wout_ref[...],
                            preferred_element_type=jnp.float32)
                    + bout_ref[...]).astype(out_ref.dtype)


def lstm_forward(prop_state, params, *, batch_size, n_node, L, state_dim,
                 hidden_dim, output_dim, batch_tile=None, core_split=1,
                 compute_dtype=jnp.float32, gx_dtype=None):
    """prop_state: (batchSize, n_node, L, state_dim) -> (batchSize, n_node, output_dim).

    batch_tile: rows per grid tile (auto if None; must be a multiple of 8).
    core_split: number of TensorCores to split the batch axis over (2 on v7x).
    compute_dtype: dtype of MXU operands (bfloat16 recommended on v6e/v7x);
                   gate math / carried state stay float32.
    """
    N = batch_size * n_node
    D_pad = _round_up(state_dim, 128)
    H_pad = _round_up(hidden_dim, 128)
    O_pad = _round_up(output_dim, 128)
    H = hidden_dim
    if gx_dtype is None:
        gx_dtype = compute_dtype

    # ---- tile selection: one tile per core if it fits, capped at 256 rows ------
    if batch_tile is None:
        per_core = pl.cdiv(N, core_split)
        TN = min(_round_up(per_core, 8), 256)
    else:
        TN = batch_tile
    assert TN % 8 == 0, "batch_tile must be a multiple of 8 (sublane alignment)"
    N_pad = _round_up(max(N, TN), TN)
    num_tiles = N_pad // TN
    if num_tiles % core_split != 0:          # keep cores evenly loaded
        num_tiles = _round_up(num_tiles, core_split)
        N_pad = num_tiles * TN

    # ---- input: (B, n_node, L, D) -> time-major padded (L, N_pad, D_pad) -------
    # TODO(synk): for very large L*N, skip the D padding in HBM (pass true last
    # dim, pad in-kernel) to cut the x DMA stream by state_dim/D_pad.
    x = prop_state.reshape(N, L, state_dim).astype(jnp.float32)
    x = jnp.transpose(x, (1, 0, 2))                                   # (L, N, D)
    x_pad = jnp.zeros((L, N_pad, D_pad), compute_dtype)
    x_pad = x_pad.at[:, :N, :state_dim].set(x.astype(compute_dtype))

    # ---- weights: transpose + pad; each gate gets its own 128-aligned block ----
    def pad_gates_T(w, in_dim, in_pad):
        # w: (4H, in_dim) in torch order (i,f,g,o) -> (in_pad, 4*H_pad), order (i,f,o,g)
        wt = jnp.zeros((in_pad, 4 * H_pad), jnp.float32)
        for dst, src in enumerate(_GATE_ORDER):
            blk = w[src * H:(src + 1) * H, :].T                       # (in_dim, H)
            wt = wt.at[:in_dim, dst * H_pad:dst * H_pad + H].set(blk)
        return wt

    w_ih_p = pad_gates_T(params["w_ih"], state_dim, D_pad).astype(compute_dtype)
    w_hh_p = pad_gates_T(params["w_hh"], hidden_dim, H_pad).astype(compute_dtype)

    b_sum = params["b_ih"] + params["b_hh"]                            # (4H,)
    b_p = jnp.zeros((1, 4 * H_pad), jnp.float32)
    for dst, src in enumerate(_GATE_ORDER):
        b_p = b_p.at[0, dst * H_pad:dst * H_pad + H].set(b_sum[src * H:(src + 1) * H])

    w_out_p = jnp.zeros((H_pad, O_pad), jnp.float32)
    w_out_p = w_out_p.at[:hidden_dim, :output_dim].set(params["w_out"].T)
    w_out_p = w_out_p.astype(compute_dtype)
    b_out_p = jnp.zeros((1, O_pad), jnp.float32).at[0, :output_dim].set(params["b_out"])

    # ---- per-generation VMEM budget -------------------------------------------
    isz_c = jnp.dtype(compute_dtype).itemsize
    isz_g = jnp.dtype(gx_dtype).itemsize
    vmem_est = (2 * L * TN * D_pad * isz_c                 # x block (double-buffered)
                + L * TN * 4 * H_pad * isz_g               # gx scratch
                + 2 * (D_pad + H_pad) * 4 * H_pad * isz_c  # W_ih, W_hh
                + 2 * H_pad * O_pad * isz_c                # W_out
                + 2 * (4 * H_pad + O_pad) * 4              # biases
                + 2 * TN * O_pad * 4                       # out block
                + 4 * TN * 4 * H_pad * 4)                  # gates / h / c working set
    # Cap at 64 MiB so the same tiling also fits v7x's smaller physical VMEM.
    vmem_limit = int(min(max(2 * vmem_est, 32 * 1024 * 1024), 64 * 1024 * 1024))

    kernel = functools.partial(_lstm_kernel, time_unroll=min(L, 8))

    out = pl.pallas_call(
        kernel,
        out_shape=jax.ShapeDtypeStruct((N_pad, O_pad), jnp.float32),
        grid_spec=pltpu.PrefetchScalarGridSpec(
            num_scalar_prefetch=0,
            grid=(num_tiles,),                             # independent batch tiles
            in_specs=[
                pl.BlockSpec((L, TN, D_pad), lambda i: (0, i, 0)),       # x chunk
                # Constant-index blocks below are fetched once and not re-DMA'd
                # across tiles by the pipeline; for very large H_pad, hoist them
                # to pl.ANY + one-time copy (or Buffered(1)) to halve footprint.
                pl.BlockSpec((D_pad, 4 * H_pad), lambda i: (0, 0)),      # W_ih^T
                pl.BlockSpec((H_pad, 4 * H_pad), lambda i: (0, 0)),      # W_hh^T
                pl.BlockSpec((1, 4 * H_pad), lambda i: (0, 0)),          # bias
                pl.BlockSpec((H_pad, O_pad), lambda i: (0, 0)),          # W_out^T
                pl.BlockSpec((1, O_pad), lambda i: (0, 0)),              # b_out
            ],
            out_specs=pl.BlockSpec((TN, O_pad), lambda i: (i, 0)),
            scratch_shapes=[
                pltpu.VMEM((L, TN, 4 * H_pad), gx_dtype),   # precomputed x-gates
            ],
        ),
        compiler_params=pltpu.CompilerParams(
            dimension_semantics=("parallel",),              # batch tiles independent
            vmem_limit_bytes=vmem_limit),
    )(x_pad, w_ih_p, w_hh_p, b_p, w_out_p, b_out_p)

    return out[:N, :output_dim].reshape(batch_size, n_node, output_dim)


def lstm_reference(prop_state, params, *, batch_size, n_node, L, state_dim,
                   hidden_dim, output_dim):
    """Pure-JAX reference matching torch.nn.LSTM (gate order i,f,g,o) + Linear."""
    N = batch_size * n_node
    x = prop_state.reshape(N, L, state_dim)
    h = jnp.zeros((N, hidden_dim), jnp.float32)
    c = jnp.zeros((N, hidden_dim), jnp.float32)
    w_ih, w_hh = params["w_ih"], params["w_hh"]
    b = params["b_ih"] + params["b_hh"]
    H = hidden_dim
    for t in range(L):
        gates = x[:, t, :] @ w_ih.T + h @ w_hh.T + b
        i_g = jax.nn.sigmoid(gates[:, 0 * H:1 * H])
        f_g = jax.nn.sigmoid(gates[:, 1 * H:2 * H])
        g_g = jnp.tanh(gates[:, 2 * H:3 * H])
        o_g = jax.nn.sigmoid(gates[:, 3 * H:4 * H])
        c = f_g * c + i_g * g_g
        h = o_g * jnp.tanh(c)
    out = h @ params["w_out"].T + params["b_out"]
    return out.reshape(batch_size, n_node, output_dim)


def init_params(key, *, state_dim, hidden_dim, output_dim):
    k1, k2, k3, k4, k5 = jax.random.split(key, 5)
    bound = 1.0 / jnp.sqrt(hidden_dim)  # PyTorch default LSTM init
    params = {
        "w_ih": jax.random.uniform(k1, (4 * hidden_dim, state_dim), jnp.float32,
                                   -bound, bound),
        "w_hh": jax.random.uniform(k2, (4 * hidden_dim, hidden_dim), jnp.float32,
                                   -bound, bound),
        "b_ih": jax.random.uniform(k3, (4 * hidden_dim,), jnp.float32, -bound, bound),
        "b_hh": jax.random.uniform(k4, (4 * hidden_dim,), jnp.float32, -bound, bound),
        # Linear: _initialization() -> weight ~ N(0, 0.02), bias = 0
        "w_out": 0.02 * jax.random.normal(k5, (output_dim, hidden_dim), jnp.float32),
        "b_out": jnp.zeros((output_dim,), jnp.float32),
    }
    return params


if __name__ == "__main__":
    batch_size = 2
    n_node = 5
    L = 8
    state_dim = 16
    hidden_dim = 32
    output_dim = 4

    key = jax.random.PRNGKey(0)
    k_x, k_p = jax.random.split(key)
    prop_state = jax.random.normal(
        k_x, (batch_size, n_node, L, state_dim), dtype=jnp.float32)
    params = init_params(k_p, state_dim=state_dim, hidden_dim=hidden_dim,
                         output_dim=output_dim)

    out = lstm_forward(prop_state, params, batch_size=batch_size, n_node=n_node,
                       L=L, state_dim=state_dim, hidden_dim=hidden_dim,
                       output_dim=output_dim)
    out = jax.block_until_ready(out)

    ref = lstm_reference(prop_state, params, batch_size=batch_size, n_node=n_node,
                         L=L, state_dim=state_dim, hidden_dim=hidden_dim,
                         output_dim=output_dim)
    assert out.shape == (batch_size, n_node, output_dim)
    assert jnp.allclose(out, ref, atol=2e-5, rtol=2e-5), "mismatch vs reference"

    print("KERNEL_OK")
</pallas_src>

<mosaic_0001>
module attributes {stable_mosaic.version = 11 : i64} {
  func.func @_lstm_kernel(%arg0: i32, %arg1: memref<8x16x128xf32, #tpu.memory_space<vmem>>, %arg2: memref<128x512xf32, #tpu.memory_space<vmem>>, %arg3: memref<128x512xf32, #tpu.memory_space<vmem>>, %arg4: memref<1x512xf32, #tpu.memory_space<vmem>>, %arg5: memref<128x128xf32, #tpu.memory_space<vmem>>, %arg6: memref<1x128xf32, #tpu.memory_space<vmem>>, %arg7: memref<16x128xf32, #tpu.memory_space<vmem>>, %arg8: memref<8x16x512xf32, #tpu.memory_space<vmem>>) attributes {dimension_semantics = [#tpu.dimension_semantics<parallel>], iteration_bounds = array<i64: 1>, scalar_prefetch = 0 : i64, scratch_operands = 1 : i64, tpu.core_type = #tpu.core_type<tc>, window_params = [{transform_indices = @transform_0, window_bounds = array<i64: 8, 16, 128>}, {pipeline_mode = #tpu.pipeline_mode<synchronous>, transform_indices = @transform_1, window_bounds = array<i64: 128, 512>}, {pipeline_mode = #tpu.pipeline_mode<synchronous>, transform_indices = @transform_2, window_bounds = array<i64: 128, 512>}, {pipeline_mode = #tpu.pipeline_mode<synchronous>, transform_indices = @transform_3, window_bounds = array<i64: 1, 512>}, {pipeline_mode = #tpu.pipeline_mode<synchronous>, transform_indices = @transform_4, window_bounds = array<i64: 128, 128>}, {pipeline_mode = #tpu.pipeline_mode<synchronous>, transform_indices = @transform_5, window_bounds = array<i64: 1, 128>}, {transform_indices = @transform_6, window_bounds = array<i64: 16, 128>}]} {
    %c0 = arith.constant 0 : index
    %c0_0 = arith.constant 0 : index
    %c0_1 = arith.constant 0 : index
    %0 = vector.load %arg1[%c0, %c0_0, %c0_1] : memref<8x16x128xf32, #tpu.memory_space<vmem>>, vector<8x16x128xf32>
    %1 = vector.shape_cast %0 : vector<8x16x128xf32> to vector<128x128xf32>
    %c0_2 = arith.constant 0 : index
    %c0_3 = arith.constant 0 : index
    %2 = vector.load %arg2[%c0_2, %c0_3] : memref<128x512xf32, #tpu.memory_space<vmem>>, vector<128x512xf32>
    %cst = arith.constant dense<0.000000e+00> : vector<128x512xf32>
    %3 = tpu.matmul %1, %2, %cst {dimension_numbers = #tpu.dot_dimension_numbers<[1], [0], [0], [1], [0, 0, 1, 1], [], []>} : vector<128x128xf32>, vector<128x512xf32>, vector<128x512xf32> -> vector<128x512xf32>
    %c0_4 = arith.constant 0 : index
    %c0_5 = arith.constant 0 : index
    %4 = vector.load %arg4[%c0_4, %c0_5] : memref<1x512xf32, #tpu.memory_space<vmem>>, vector<1x512xf32>
    %5 = vector.broadcast %4 : vector<1x512xf32> to vector<128x512xf32>
    %6 = arith.addf %3, %5 : vector<128x512xf32>
    %7 = vector.shape_cast %6 : vector<128x512xf32> to vector<8x16x512xf32>
    %c0_6 = arith.constant 0 : index
    %c0_7 = arith.constant 0 : index
    %c0_8 = arith.constant 0 : index
    %8 = vector.load %arg8[%c0_6, %c0_7, %c0_8] : memref<8x16x512xf32, #tpu.memory_space<vmem>>, vector<8x16x512xf32>
    tpu.vector_store %arg8[%c0_6, %c0_7, %c0_8], %7 {strides = array<i32>} : memref<8x16x512xf32, #tpu.memory_space<vmem>>, vector<8x16x512xf32>,
    %cst_9 = arith.constant 0.000000e+00 : f32
    %9 = vector.broadcast %cst_9 : f32 to vector<16x128xf32>
    %cst_10 = arith.constant 0.000000e+00 : f32
    %10 = vector.broadcast %cst_10 : f32 to vector<16x128xf32>
    %c0_i32 = arith.constant 0 : i32
    %11 = arith.index_cast %c0_i32 : i32 to index
    %c0_11 = arith.constant 0 : index
    %c0_12 = arith.constant 0 : index
    %12 = vector.load %arg8[%11, %c0_11, %c0_12] : memref<8x16x512xf32, #tpu.memory_space<vmem>>, vector<1x16x512xf32>
    %13 = vector.shape_cast %12 : vector<1x16x512xf32> to vector<16x512xf32>
    %c0_13 = arith.constant 0 : index
    %c0_14 = arith.constant 0 : index
    %14 = vector.load %arg3[%c0_13, %c0_14] : memref<128x512xf32, #tpu.memory_space<vmem>>, vector<128x512xf32>
    %cst_15 = arith.constant dense<0.000000e+00> : vector<16x512xf32>
    %15 = tpu.matmul %9, %14, %cst_15 {dimension_numbers = #tpu.dot_dimension_numbers<[1], [0], [0], [1], [0, 0, 1, 1], [], []>} : vector<16x128xf32>, vector<128x512xf32>, vector<16x512xf32> -> vector<16x512xf32>
    %16 = arith.addf %13, %15 : vector<16x512xf32>
    %17 = vector.extract_strided_slice %16 {offsets = [0, 0], sizes = [16, 384], strides = [1, 1]} : vector<16x512xf32> to vector<16x384xf32>
    %18 = arith.negf %17 : vector<16x384xf32>
    %19 = math.exp %18 : vector<16x384xf32>
    %cst_16 = arith.constant 1.000000e+00 : f32
    %20 = vector.broadcast %cst_16 : f32 to vector<16x384xf32>
    %21 = arith.addf %20, %19 : vector<16x384xf32>
    %22 = arith.divf %20, %21 : vector<16x384xf32>
    %23 = vector.extract_strided_slice %22 {offsets = [0, 0], sizes = [16, 128], strides = [1, 1]} : vector<16x384xf32> to vector<16x128xf32>
    %24 = vector.extract_strided_slice %22 {offsets = [0, 128], sizes = [16, 128], strides = [1, 1]} : vector<16x384xf32> to vector<16x128xf32>
    %25 = vector.extract_strided_slice %22 {offsets = [0, 256], sizes = [16, 128], strides = [1, 1]} : vector<16x384xf32> to vector<16x128xf32>
    %26 = vector.extract_strided_slice %16 {offsets = [0, 384], sizes = [16, 128], strides = [1, 1]} : vector<16x512xf32> to vector<16x128xf32>
    %27 = math.tanh %26 : vector<16x128xf32>
    %28 = arith.mulf %24, %10 : vector<16x128xf32>
    %29 = arith.mulf %23, %27 : vector<16x128xf32>
    %30 = arith.addf %28, %29 : vector<16x128xf32>
    %31 = math.tanh %30 : vector<16x128xf32>
    %32 = arith.mulf %25, %31 : vector<16x128xf32>
    %c1_i32 = arith.constant 1 : i32
    %33 = arith.index_cast %c1_i32 : i32 to index
    %c0_17 = arith.constant 0 : index
    %c0_18 = arith.constant 0 : index
    %34 = vector.load %arg8[%33, %c0_17, %c0_18] : memref<8x16x512xf32, #tpu.memory_space<vmem>>, vector<1x16x512xf32>
    %35 = vector.shape_cast %34 : vector<1x16x512xf32> to vector<16x512xf32>
    %c0_19 = arith.constant 0 : index
    %c0_20 = arith.constant 0 : index
    %36 = vector.load %arg3[%c0_19, %c0_20] : memref<128x512xf32, #tpu.memory_space<vmem>>, vector<128x512xf32>
    %cst_21 = arith.constant dense<0.000000e+00> : vector<16x512xf32>
    %37 = tpu.matmul %32, %36, %cst_21 {dimension_numbers = #tpu.dot_dimension_numbers<[1], [0], [0], [1], [0, 0, 1, 1], [], []>} : vector<16x128xf32>, vector<128x512xf32>, vector<16x512xf32> -> vector<16x512xf32>
    %38 = arith.addf %35, %37 : vector<16x512xf32>
    %39 = vector.extract_strided_slice %38 {offsets = [0, 0], sizes = [16, 384], strides = [1, 1]} : vector<16x512xf32> to vector<16x384xf32>
    %40 = arith.negf %39 : vector<16x384xf32>
    %41 = math.exp %40 : vector<16x384xf32>
    %cst_22 = arith.constant 1.000000e+00 : f32
    %42 = vector.broadcast %cst_22 : f32 to vector<16x384xf32>
    %43 = arith.addf %42, %41 : vector<16x384xf32>
    %44 = arith.divf %42, %43 : vector<16x384xf32>
    %45 = vector.extract_strided_slice %44 {offsets = [0, 0], sizes = [16, 128], strides = [1, 1]} : vector<16x384xf32> to vector<16x128xf32>
    %46 = vector.extract_strided_slice %44 {offsets = [0, 128], sizes = [16, 128], strides = [1, 1]} : vector<16x384xf32> to vector<16x128xf32>
    %47 = vector.extract_strided_slice %44 {offsets = [0, 256], sizes = [16, 128], strides = [1, 1]} : vector<16x384xf32> to vector<16x128xf32>
    %48 = vector.extract_strided_slice %38 {offsets = [0, 384], sizes = [16, 128], strides = [1, 1]} : vector<16x512xf32> to vector<16x128xf32>
    %49 = math.tanh %48 : vector<16x128xf32>
    %50 = arith.mulf %46, %30 : vector<16x128xf32>
    %51 = arith.mulf %45, %49 : vector<16x128xf32>
    %52 = arith.addf %50, %51 : vector<16x128xf32>
    %53 = math.tanh %52 : vector<16x128xf32>
    %54 = arith.mulf %47, %53 : vector<16x128xf32>
    %c2_i32 = arith.constant 2 : i32
    %55 = arith.index_cast %c2_i32 : i32 to index
    %c0_23 = arith.constant 0 : index
    %c0_24 = arith.constant 0 : index
    %56 = vector.load %arg8[%55, %c0_23, %c0_24] : memref<8x16x512xf32, #tpu.memory_space<vmem>>, vector<1x16x512xf32>
    %57 = vector.shape_cast %56 : vector<1x16x512xf32> to vector<16x512xf32>
    %c0_25 = arith.constant 0 : index
    %c0_26 = arith.constant 0 : index
    %58 = vector.load %arg3[%c0_25, %c0_26] : memref<128x512xf32, #tpu.memory_space<vmem>>, vector<128x512xf32>
    %cst_27 = arith.constant dense<0.000000e+00> : vector<16x512xf32>
    %59 = tpu.matmul %54, %58, %cst_27 {dimension_numbers = #tpu.dot_dimension_numbers<[1], [0], [0], [1], [0, 0, 1, 1], [], []>} : vector<16x128xf32>, vector<128x512xf32>, vector<16x512xf32> -> vector<16x512xf32>
    %60 = arith.addf %57, %59 : vector<16x512xf32>
    %61 = vector.extract_strided_slice %60 {offsets = [0, 0], sizes = [16, 384], strides = [1, 1]} : vector<16x512xf32> to vector<16x384xf32>
    %62 = arith.negf %61 : vector<16x384xf32>
    %63 = math.exp %62 : vector<16x384xf32>
    %cst_28 = arith.constant 1.000000e+00 : f32
    %64 = vector.broadcast %cst_28 : f32 to vector<16x384xf32>
    %65 = arith.addf %64, %63 : vector<16x384xf32>
    %66 = arith.divf %64, %65 : vector<16x384xf32>
    %67 = vector.extract_strided_slice %66 {offsets = [0, 0], sizes = [16, 128], strides = [1, 1]} : vector<16x384xf32> to vector<16x128xf32>
    %68 = vector.extract_strided_slice %66 {offsets = [0, 128], sizes = [16, 128], strides = [1, 1]} : vector<16x384xf32> to vector<16x128xf32>
    %69 = vector.extract_strided_slice %66 {offsets = [0, 256], sizes = [16, 128], strides = [1, 1]} : vector<16x384xf32> to vector<16x128xf32>
    %70 = vector.extract_strided_slice %60 {offsets = [0, 384], sizes = [16, 128], strides = [1, 1]} : vector<16x512xf32> to vector<16x128xf32>
    %71 = math.tanh %70 : vector<16x128xf32>
    %72 = arith.mulf %68, %52 : vector<16x128xf32>
    %73 = arith.mulf %67, %71 : vector<16x128xf32>
    %74 = arith.addf %72, %73 : vector<16x128xf32>
    %75 = math.tanh %74 : vector<16x128xf32>
    %76 = arith.mulf %69, %75 : vector<16x128xf32>
    %c3_i32 = arith.constant 3 : i32
    %77 = arith.index_cast %c3_i32 : i32 to index
    %c0_29 = arith.constant 0 : index
    %c0_30 = arith.constant 0 : index
    %78 = vector.load %arg8[%77, %c0_29, %c0_30] : memref<8x16x512xf32, #tpu.memory_space<vmem>>, vector<1x16x512xf32>
    %79 = vector.shape_cast %78 : vector<1x16x512xf32> to vector<16x512xf32>
    %c0_31 = arith.constant 0 : index
    %c0_32 = arith.constant 0 : index
    %80 = vector.load %arg3[%c0_31, %c0_32] : memref<128x512xf32, #tpu.memory_space<vmem>>, vector<128x512xf32>
    %cst_33 = arith.constant dense<0.000000e+00> : vector<16x512xf32>
    %81 = tpu.matmul %76, %80, %cst_33 {dimension_numbers = #tpu.dot_dimension_numbers<[1], [0], [0], [1], [0, 0, 1, 1], [], []>} : vector<16x128xf32>, vector<128x512xf32>, vector<16x512xf32> -> vector<16x512xf32>
    %82 = arith.addf %79, %81 : vector<16x512xf32>
    %83 = vector.extract_strided_slice %82 {offsets = [0, 0], sizes = [16, 384], strides = [1, 1]} : vector<16x512xf32> to vector<16x384xf32>
    %84 = arith.negf %83 : vector<16x384xf32>
    %85 = math.exp %84 : vector<16x384xf32>
    %cst_34 = arith.constant 1.000000e+00 : f32
    %86 = vector.broadcast %cst_34 : f32 to vector<16x384xf32>
    %87 = arith.addf %86, %85 : vector<16x384xf32>
    %88 = arith.divf %86, %87 : vector<16x384xf32>
    %89 = vector.extract_strided_slice %88 {offsets = [0, 0], sizes = [16, 128], strides = [1, 1]} : vector<16x384xf32> to vector<16x128xf32>
    %90 = vector.extract_strided_slice %88 {offsets = [0, 128], sizes = [16, 128], strides = [1, 1]} : vector<16x384xf32> to vector<16x128xf32>
    %91 = vector.extract_strided_slice %88 {offsets = [0, 256], sizes = [16, 128], strides = [1, 1]} : vector<16x384xf32> to vector<16x128xf32>
    %92 = vector.extract_strided_slice %82 {offsets = [0, 384], sizes = [16, 128], strides = [1, 1]} : vector<16x512xf32> to vector<16x128xf32>
    %93 = math.tanh %92 : vector<16x128xf32>
    %94 = arith.mulf %90, %74 : vector<16x128xf32>
    %95 = arith.mulf %89, %93 : vector<16x128xf32>
    %96 = arith.addf %94, %95 : vector<16x128xf32>
    %97 = math.tanh %96 : vector<16x128xf32>
    %98 = arith.mulf %91, %97 : vector<16x128xf32>
    %c4_i32 = arith.constant 4 : i32
    %99 = arith.index_cast %c4_i32 : i32 to index
    %c0_35 = arith.constant 0 : index
    %c0_36 = arith.constant 0 : index
    %100 = vector.load %arg8[%99, %c0_35, %c0_36] : memref<8x16x512xf32, #tpu.memory_space<vmem>>, vector<1x16x512xf32>
    %101 = vector.shape_cast %100 : vector<1x16x512xf32> to vector<16x512xf32>
    %c0_37 = arith.constant 0 : index
    %c0_38 = arith.constant 0 : index
    %102 = vector.load %arg3[%c0_37, %c0_38] : memref<128x512xf32, #tpu.memory_space<vmem>>, vector<128x512xf32>
    %cst_39 = arith.constant dense<0.000000e+00> : vector<16x512xf32>
    %103 = tpu.matmul %98, %102, %cst_39 {dimension_numbers = #tpu.dot_dimension_numbers<[1], [0], [0], [1], [0, 0, 1, 1], [], []>} : vector<16x128xf32>, vector<128x512xf32>, vector<16x512xf32> -> vector<16x512xf32>
    %104 = arith.addf %101, %103 : vector<16x512xf32>
    %105 = vector.extract_strided_slice %104 {offsets = [0, 0], sizes = [16, 384], strides = [1, 1]} : vector<16x512xf32> to vector<16x384xf32>
    %106 = arith.negf %105 : vector<16x384xf32>
    %107 = math.exp %106 : vector<16x384xf32>
    %cst_40 = arith.constant 1.000000e+00 : f32
    %108 = vector.broadcast %cst_40 : f32 to vector<16x384xf32>
    %109 = arith.addf %108, %107 : vector<16x384xf32>
    %110 = arith.divf %108, %109 : vector<16x384xf32>
    %111 = vector.extract_strided_slice %110 {offsets = [0, 0], sizes = [16, 128], strides = [1, 1]} : vector<16x384xf32> to vector<16x128xf32>
    %112 = vector.extract_strided_slice %110 {offsets = [0, 128], sizes = [16, 128], strides = [1, 1]} : vector<16x384xf32> to vector<16x128xf32>
    %113 = vector.extract_strided_slice %110 {offsets = [0, 256], sizes = [16, 128], strides = [1, 1]} : vector<16x384xf32> to vector<16x128xf32>
    %114 = vector.extract_strided_slice %104 {offsets = [0, 384], sizes = [16, 128], strides = [1, 1]} : vector<16x512xf32> to vector<16x128xf32>
    %115 = math.tanh %114 : vector<16x128xf32>
    %116 = arith.mulf %112, %96 : vector<16x128xf32>
    %117 = arith.mulf %111, %115 : vector<16x128xf32>
    %118 = arith.addf %116, %117 : vector<16x128xf32>
    %119 = math.tanh %118 : vector<16x128xf32>
    %120 = arith.mulf %113, %119 : vector<16x128xf32>
    %c5_i32 = arith.constant 5 : i32
    %121 = arith.index_cast %c5_i32 : i32 to index
    %c0_41 = arith.constant 0 : index
    %c0_42 = arith.constant 0 : index
    %122 = vector.load %arg8[%121, %c0_41, %c0_42] : memref<8x16x512xf32, #tpu.memory_space<vmem>>, vector<1x16x512xf32>
    %123 = vector.shape_cast %122 : vector<1x16x512xf32> to vector<16x512xf32>
    %c0_43 = arith.constant 0 : index
    %c0_44 = arith.constant 0 : index
    %124 = vector.load %arg3[%c0_43, %c0_44] : memref<128x512xf32, #tpu.memory_space<vmem>>, vector<128x512xf32>
    %cst_45 = arith.constant dense<0.000000e+00> : vector<16x512xf32>
    %125 = tpu.matmul %120, %124, %cst_45 {dimension_numbers = #tpu.dot_dimension_numbers<[1], [0], [0], [1], [0, 0, 1, 1], [], []>} : vector<16x128xf32>, vector<128x512xf32>, vector<16x512xf32> -> vector<16x512xf32>
    %126 = arith.addf %123, %125 : vector<16x512xf32>
    %127 = vector.extract_strided_slice %126 {offsets = [0, 0], sizes = [16, 384], strides = [1, 1]} : vector<16x512xf32> to vector<16x384xf32>
    %128 = arith.negf %127 : vector<16x384xf32>
    %129 = math.exp %128 : vector<16x384xf32>
    %cst_46 = arith.constant 1.000000e+00 : f32
    %130 = vector.broadcast %cst_46 : f32 to vector<16x384xf32>
    %131 = arith.addf %130, %129 : vector<16x384xf32>
    %132 = arith.divf %130, %131 : vector<16x384xf32>
    %133 = vector.extract_strided_slice %132 {offsets = [0, 0], sizes = [16, 128], strides = [1, 1]} : vector<16x384xf32> to vector<16x128xf32>
    %134 = vector.extract_strided_slice %132 {offsets = [0, 128], sizes = [16, 128], strides = [1, 1]} : vector<16x384xf32> to vector<16x128xf32>
    %135 = vector.extract_strided_slice %132 {offsets = [0, 256], sizes = [16, 128], strides = [1, 1]} : vector<16x384xf32> to vector<16x128xf32>
    %136 = vector.extract_strided_slice %126 {offsets = [0, 384], sizes = [16, 128], strides = [1, 1]} : vector<16x512xf32> to vector<16x128xf32>
    %137 = math.tanh %136 : vector<16x128xf32>
    %138 = arith.mulf %134, %118 : vector<16x128xf32>
    %139 = arith.mulf %133, %137 : vector<16x128xf32>
    %140 = arith.addf %138, %139 : vector<16x128xf32>
    %141 = math.tanh %140 : vector<16x128xf32>
    %142 = arith.mulf %135, %141 : vector<16x128xf32>
    %c6_i32 = arith.constant 6 : i32
    %143 = arith.index_cast %c6_i32 : i32 to index
    %c0_47 = arith.constant 0 : index
    %c0_48 = arith.constant 0 : index
    %144 = vector.load %arg8[%143, %c0_47, %c0_48] : memref<8x16x512xf32, #tpu.memory_space<vmem>>, vector<1x16x512xf32>
    %145 = vector.shape_cast %144 : vector<1x16x512xf32> to vector<16x512xf32>
    %c0_49 = arith.constant 0 : index
    %c0_50 = arith.constant 0 : index
    %146 = vector.load %arg3[%c0_49, %c0_50] : memref<128x512xf32, #tpu.memory_space<vmem>>, vector<128x512xf32>
    %cst_51 = arith.constant dense<0.000000e+00> : vector<16x512xf32>
    %147 = tpu.matmul %142, %146, %cst_51 {dimension_numbers = #tpu.dot_dimension_numbers<[1], [0], [0], [1], [0, 0, 1, 1], [], []>} : vector<16x128xf32>, vector<128x512xf32>, vector<16x512xf32> -> vector<16x512xf32>
    %148 = arith.addf %145, %147 : vector<16x512xf32>
    %149 = vector.extract_strided_slice %148 {offsets = [0, 0], sizes = [16, 384], strides = [1, 1]} : vector<16x512xf32> to vector<16x384xf32>
    %150 = arith.negf %149 : vector<16x384xf32>
    %151 = math.exp %150 : vector<16x384xf32>
    %cst_52 = arith.constant 1.000000e+00 : f32
    %152 = vector.broadcast %cst_52 : f32 to vector<16x384xf32>
    %153 = arith.addf %152, %151 : vector<16x384xf32>
    %154 = arith.divf %152, %153 : vector<16x384xf32>
    %155 = vector.extract_strided_slice %154 {offsets = [0, 0], sizes = [16, 128], strides = [1, 1]} : vector<16x384xf32> to vector<16x128xf32>
    %156 = vector.extract_strided_slice %154 {offsets = [0, 128], sizes = [16, 128], strides = [1, 1]} : vector<16x384xf32> to vector<16x128xf32>
    %157 = vector.extract_strided_slice %154 {offsets = [0, 256], sizes = [16, 128], strides = [1, 1]} : vector<16x384xf32> to vector<16x128xf32>
    %158 = vector.extract_strided_slice %148 {offsets = [0, 384], sizes = [16, 128], strides = [1, 1]} : vector<16x512xf32> to vector<16x128xf32>
    %159 = math.tanh %158 : vector<16x128xf32>
    %160 = arith.mulf %156, %140 : vector<16x128xf32>
    %161 = arith.mulf %155, %159 : vector<16x128xf32>
    %162 = arith.addf %160, %161 : vector<16x128xf32>
    %163 = math.tanh %162 : vector<16x128xf32>
    %164 = arith.mulf %157, %163 : vector<16x128xf32>
    %c7_i32 = arith.constant 7 : i32
    %165 = arith.index_cast %c7_i32 : i32 to index
    %c0_53 = arith.constant 0 : index
    %c0_54 = arith.constant 0 : index
    %166 = vector.load %arg8[%165, %c0_53, %c0_54] : memref<8x16x512xf32, #tpu.memory_space<vmem>>, vector<1x16x512xf32>
    %167 = vector.shape_cast %166 : vector<1x16x512xf32> to vector<16x512xf32>
    %c0_55 = arith.constant 0 : index
    %c0_56 = arith.constant 0 : index
    %168 = vector.load %arg3[%c0_55, %c0_56] : memref<128x512xf32, #tpu.memory_space<vmem>>, vector<128x512xf32>
    %cst_57 = arith.constant dense<0.000000e+00> : vector<16x512xf32>
    %169 = tpu.matmul %164, %168, %cst_57 {dimension_numbers = #tpu.dot_dimension_numbers<[1], [0], [0], [1], [0, 0, 1, 1], [], []>} : vector<16x128xf32>, vector<128x512xf32>, vector<16x512xf32> -> vector<16x512xf32>
    %170 = arith.addf %167, %169 : vector<16x512xf32>
    %171 = vector.extract_strided_slice %170 {offsets = [0, 0], sizes = [16, 384], strides = [1, 1]} : vector<16x512xf32> to vector<16x384xf32>
    %172 = arith.negf %171 : vector<16x384xf32>
    %173 = math.exp %172 : vector<16x384xf32>
    %cst_58 = arith.constant 1.000000e+00 : f32
    %174 = vector.broadcast %cst_58 : f32 to vector<16x384xf32>
    %175 = arith.addf %174, %173 : vector<16x384xf32>
    %176 = arith.divf %174, %175 : vector<16x384xf32>
    %177 = vector.extract_strided_slice %176 {offsets = [0, 0], sizes = [16, 128], strides = [1, 1]} : vector<16x384xf32> to vector<16x128xf32>
    %178 = vector.extract_strided_slice %176 {offsets = [0, 128], sizes = [16, 128], strides = [1, 1]} : vector<16x384xf32> to vector<16x128xf32>
    %179 = vector.extract_strided_slice %176 {offsets = [0, 256], sizes = [16, 128], strides = [1, 1]} : vector<16x384xf32> to vector<16x128xf32>
    %180 = vector.extract_strided_slice %170 {offsets = [0, 384], sizes = [16, 128], strides = [1, 1]} : vector<16x512xf32> to vector<16x128xf32>
    %181 = math.tanh %180 : vector<16x128xf32>
    %182 = arith.mulf %178, %162 : vector<16x128xf32>
    %183 = arith.mulf %177, %181 : vector<16x128xf32>
    %184 = arith.addf %182, %183 : vector<16x128xf32>
    %185 = math.tanh %184 : vector<16x128xf32>
    %186 = arith.mulf %179, %185 : vector<16x128xf32>
    %c8_i32 = arith.constant 8 : i32
    %c0_59 = arith.constant 0 : index
    %c0_60 = arith.constant 0 : index
    %187 = vector.load %arg5[%c0_59, %c0_60] : memref<128x128xf32, #tpu.memory_space<vmem>>, vector<128x128xf32>
    %cst_61 = arith.constant dense<0.000000e+00> : vector<16x128xf32>
    %188 = tpu.matmul %186, %187, %cst_61 {dimension_numbers = #tpu.dot_dimension_numbers<[1], [0], [0], [1], [0, 0, 1, 1], [], []>} : vector<16x128xf32>, vector<128x128xf32>, vector<16x128xf32> -> vector<16x128xf32>
    %c0_62 = arith.constant 0 : index
    %c0_63 = arith.constant 0 : index
    %189 = vector.load %arg6[%c0_62, %c0_63] : memref<1x128xf32, #tpu.memory_space<vmem>>, vector<1x128xf32>
    %190 = vector.broadcast %189 : vector<1x128xf32> to vector<16x128xf32>
    %191 = arith.addf %188, %190 : vector<16x128xf32>
    %c0_64 = arith.constant 0 : index
    %c0_65 = arith.constant 0 : index
    %192 = vector.load %arg7[%c0_64, %c0_65] : memref<16x128xf32, #tpu.memory_space<vmem>>, vector<16x128xf32>
    tpu.vector_store %arg7[%c0_64, %c0_65], %191 {strides = array<i32>} : memref<16x128xf32, #tpu.memory_space<vmem>>, vector<16x128xf32>,
    return
  }
  func.func @transform_0(%arg0: i32) -> (i32, i32, i32) {
    %c0_i32 = arith.constant 0 : i32
    %c0_i32_0 = arith.constant 0 : i32
    %c0_i32_1 = arith.constant 0 : i32
    return %c0_i32, %arg0, %c0_i32_0 : i32, i32, i32
  }
  func.func @transform_1(%arg0: i32) -> (i32, i32) {
    %c0_i32 = arith.constant 0 : i32
    %c0_i32_0 = arith.constant 0 : i32
    %c0_i32_1 = arith.constant 0 : i32
    return %c0_i32, %c0_i32_0 : i32, i32
  }
  func.func @transform_2(%arg0: i32) -> (i32, i32) {
    %c0_i32 = arith.constant 0 : i32
    %c0_i32_0 = arith.constant 0 : i32
    %c0_i32_1 = arith.constant 0 : i32
    return %c0_i32, %c0_i32_0 : i32, i32
  }
  func.func @transform_3(%arg0: i32) -> (i32, i32) {
    %c0_i32 = arith.constant 0 : i32
    %c0_i32_0 = arith.constant 0 : i32
    %c0_i32_1 = arith.constant 0 : i32
    return %c0_i32, %c0_i32_0 : i32, i32
  }
  func.func @transform_4(%arg0: i32) -> (i32, i32) {
    %c0_i32 = arith.constant 0 : i32
    %c0_i32_0 = arith.constant 0 : i32
    %c0_i32_1 = arith.constant 0 : i32
    return %c0_i32, %c0_i32_0 : i32, i32
  }
  func.func @transform_5(%arg0: i32) -> (i32, i32) {
    %c0_i32 = arith.constant 0 : i32
    %c0_i32_0 = arith.constant 0 : i32
    %c0_i32_1 = arith.constant 0 : i32
    return %c0_i32, %c0_i32_0 : i32, i32
  }
  func.func @transform_6(%arg0: i32) -> (i32, i32) {
    %c0_i32 = arith.constant 0 : i32
    %c0_i32_0 = arith.constant 0 : i32
    return %arg0, %c0_i32 : i32, i32
  }
}

</mosaic_0001>

<llo_original>
// kernel: tpu_custom_call.1
$region0: #{tpu_custom_call.1}
  #allocation0 [shape = 'u32[]', space=smem, size = 0x4, offset = 0x4, fixed_abs, tag = 'smem constant byte address 0x4 - core index']
  #allocation1 [shape = 'u32[144,128]{1,0:T(1,128)}', space=vmem, size = 0x12000, scoped, tag = 'internal scratch']
  #allocation2 [shape = 'f32[8,16,512]{2,1,0:T(8,128)}', space=vmem, size = 0x40000, scoped, tag = 'scratch operand']
  %s0 = inlined_call_operand.hbm [shape: f32[8,16,128], index: 0, kind: input, shape index: {}]
  %s1 = inlined_call_operand.hbm [shape: f32[128,512], index: 1, kind: input, shape index: {}]
  %s2 = inlined_call_operand.hbm [shape: f32[128,512], index: 2, kind: input, shape index: {}]
  %s3 = inlined_call_operand.vmem [shape: f32[1,512], index: 3, kind: input, shape index: {}]
  %s4 = inlined_call_operand.hbm [shape: f32[128,128], index: 4, kind: input, shape index: {}]
  %s5 = inlined_call_operand.vmem [shape: f32[1,128], index: 5, kind: input, shape index: {}]
  %s6 = inlined_call_operand.hbm [shape: f32[16,128], index: 6, kind: output, shape index: {}]
  %s7 = sld [smem:[#allocation0]]
  $region50: #{tpu_custom_call.1} parent=0
    _
  %s9 = ssub.s32 1, %s7
  %s10 = scalar_select 0, %s9, %s7
  $region1: #{tpu_custom_call.1} parent=0
    #allocation3 [shape = 'u8[65536]{0}', space=vmem, size = 0x10000, scoped, tag = 'input window, operand 0, single buffered']
    #allocation4 [shape = 's32[1]{0}', space=sflag, size = 0x4, scoped, tag = 'scoped memory for tpu_custom_call.1']
    #allocation5 [shape = 's32[1]{0}', space=sflag, size = 0x4, scoped, tag = 'scoped memory for tpu_custom_call.1']
    #allocation6 [shape = 'u8[262144]{0}', space=vmem, size = 0x40000, scoped, tag = 'input window, operand 1, single buffered']
    #allocation7 [shape = 's32[1]{0}', space=sflag, size = 0x4, scoped, tag = 'scoped memory for tpu_custom_call.1']
    #allocation8 [shape = 'u8[262144]{0}', space=vmem, size = 0x40000, scoped, tag = 'input window, operand 2, single buffered']
    #allocation9 [shape = 'u8[65536]{0}', space=vmem, size = 0x10000, scoped, tag = 'input window, operand 4, single buffered']
    #allocation10 [shape = 's32[1]{0}', space=sflag, size = 0x4, scoped, tag = 'scoped memory for tpu_custom_call.1']
    #allocation11 [shape = 'u8[8192]{0}', space=vmem, size = 0x2000, scoped, tag = 'output window, operand 0, single buffered']
    %11 = vsyncpa [#allocation4], 0
    %12 = vsyncpa [#allocation7], 0
    %13 = vsyncpa [#allocation10], 0
    %14 = vsyncpa [#allocation5], 0
    // Predicated region
    $region2: #{tpu_custom_call.1} parent=1 // pred_check
      _
    $region3: #{tpu_custom_call.1} parent=1 // pred_check_branch
      %16 = sbr.rel (0) target = $region5
    $region4: #{tpu_custom_call.1} parent=1 // pred_region
      %s18 = ssub.s32 2048, 2048
      %19 = vsyncadd [#allocation4], %s18
      %s20 = sshll.u32 [#allocation3], 4
      %s21 = int_to_ptr.vmem [resolvable:$true] %s20
      %26 = dma.hbm_to_vmem [thread:$0]  %s0, 2048, %s21, [#allocation4], 128, 128, 8
    $region5: #{tpu_custom_call.1} parent=1 // pred_fallthru
      _
    // Predicated region
    $region6: #{tpu_custom_call.1} parent=1 // pred_check
      _
    $region7: #{tpu_custom_call.1} parent=1 // pred_check_branch
      %28 = sbr.rel (0) target = $region9
    $region8: #{tpu_custom_call.1} parent=1 // pred_region
      %s30 = ssub.s32 8192, 8192
      %31 = vsyncadd [#allocation7], %s30
      %s32 = sshll.u32 [#allocation6], 4
      %s33 = int_to_ptr.vmem [resolvable:$true] %s32
      %38 = dma.hbm_to_vmem [thread:$0]  %s1, 8192, %s33, [#allocation7], 512, 512, 32
    $region9: #{tpu_custom_call.1} parent=1 // pred_fallthru
      _
    // Predicated region
    $region10: #{tpu_custom_call.1} parent=1 // pred_check
      _
    $region11: #{tpu_custom_call.1} parent=1 // pred_check_branch
      %40 = sbr.rel (0) target = $region13
    $region12: #{tpu_custom_call.1} parent=1 // pred_region
      %s42 = ssub.s32 8192, 8192
      %43 = vsyncadd [#allocation7], %s42
      %s44 = sshll.u32 [#allocation8], 4
      %s45 = int_to_ptr.vmem [resolvable:$true] %s44
      %50 = dma.hbm_to_vmem [thread:$0]  %s2, 8192, %s45, [#allocation7], 512, 512, 32
    $region13: #{tpu_custom_call.1} parent=1 // pred_fallthru
      _
    // Predicated region
    $region14: #{tpu_custom_call.1} parent=1 // pred_check
      _
    $region15: #{tpu_custom_call.1} parent=1 // pred_check_branch
      %52 = sbr.rel (0) target = $region17
    $region16: #{tpu_custom_call.1} parent=1 // pred_region
      _
    $region17: #{tpu_custom_call.1} parent=1 // pred_fallthru
      _
    // Predicated region
    $region18: #{tpu_custom_call.1} parent=1 // pred_check
      _
    $region19: #{tpu_custom_call.1} parent=1 // pred_check_branch
      %54 = sbr.rel (0) target = $region21
    $region20: #{tpu_custom_call.1} parent=1 // pred_region
      %s56 = ssub.s32 2048, 2048
      %57 = vsyncadd [#allocation10], %s56
      %s58 = sshll.u32 [#allocation9], 4
      %s59 = int_to_ptr.vmem [resolvable:$true] %s58
      %64 = dma.hbm_to_vmem [thread:$0]  %s4, 2048, %s59, [#allocation10], 128, 128, 8
    $region21: #{tpu_custom_call.1} parent=1 // pred_fallthru
      _
    // Predicated region
    $region22: #{tpu_custom_call.1} parent=1 // pred_check
      _
    $region23: #{tpu_custom_call.1} parent=1 // pred_check_branch
      %66 = sbr.rel (0) target = $region25
    $region24: #{tpu_custom_call.1} parent=1 // pred_region
      _
    $region25: #{tpu_custom_call.1} parent=1 // pred_fallthru
      _
    // Predicated region
    $region26: #{tpu_custom_call.1} parent=1 // pred_check
      _
    $region27: #{tpu_custom_call.1} parent=1 // pred_check_branch
      %68 = sbr.rel (0) target = $region29
    $region28: #{tpu_custom_call.1} parent=1 // pred_region
      %69 = dma.done [#allocation4], 2048
    $region29: #{tpu_custom_call.1} parent=1 // pred_fallthru
      _
    // Predicated region
    $region30: #{tpu_custom_call.1} parent=1 // pred_check
      _
    $region31: #{tpu_custom_call.1} parent=1 // pred_check_branch
      %71 = sbr.rel (0) target = $region33
    $region32: #{tpu_custom_call.1} parent=1 // pred_region
      %72 = dma.done [#allocation7], 8192
    $region33: #{tpu_custom_call.1} parent=1 // pred_fallthru
      _
    // Predicated region
    $region34: #{tpu_custom_call.1} parent=1 // pred_check
      _
    $region35: #{tpu_custom_call.1} parent=1 // pred_check_branch
      %74 = sbr.rel (0) target = $region37
    $region36: #{tpu_custom_call.1} parent=1 // pred_region
      %75 = dma.done [#allocation7], 8192
    $region37: #{tpu_custom_call.1} parent=1 // pred_fallthru
      _
    // Predicated region
    $region38: #{tpu_custom_call.1} parent=1 // pred_check
      _
    $region39: #{tpu_custom_call.1} parent=1 // pred_check_branch
      %77 = sbr.rel (0) target = $region41
    $region40: #{tpu_custom_call.1} parent=1 // pred_region
      %78 = dma.done [#allocation10], 2048
    $region41: #{tpu_custom_call.1} parent=1 // pred_fallthru
      _
    %v79 = vld [vmem:[#allocation3] sm:$0xff]
    %v80 = vld [vmem:[#allocation3 + $0x8] sm:$0xff]
    %v81 = vld [vmem:[#allocation3 + $0x10] sm:$0xff]
    %v82 = vld [vmem:[#allocation3 + $0x18] sm:$0xff]
    %v83 = vld [vmem:[#allocation3 + $0x20] sm:$0xff]
    %v84 = vld [vmem:[#allocation3 + $0x28] sm:$0xff]
    %v85 = vld [vmem:[#allocation3 + $0x30] sm:$0xff]
    %v86 = vld [vmem:[#allocation3 + $0x38] sm:$0xff]
    %v87 = vld [vmem:[#allocation3 + $0x40] sm:$0xff]
    %v88 = vld [vmem:[#allocation3 + $0x48] sm:$0xff]
    %v89 = vld [vmem:[#allocation3 + $0x50] sm:$0xff]
    %v90 = vld [vmem:[#allocation3 + $0x58] sm:$0xff]
    %v91 = vld [vmem:[#allocation3 + $0x60] sm:$0xff]
    %v92 = vld [vmem:[#allocation3 + $0x68] sm:$0xff]
    %v93 = vld [vmem:[#allocation3 + $0x70] sm:$0xff]
    %v94 = vld [vmem:[#allocation3 + $0x78] sm:$0xff]
    %v95 = vld [vmem:[#allocation6] sm:$0xff]
    %v96 = vld [vmem:[#allocation6 + $0x8] sm:$0xff]
    %v97 = vld [vmem:[#allocation6 + $0x10] sm:$0xff]
    %v98 = vld [vmem:[#allocation6 + $0x18] sm:$0xff]
    %v99 = vld [vmem:[#allocation6 + $0x20] sm:$0xff]
    %v100 = vld [vmem:[#allocation6 + $0x28] sm:$0xff]
    %v101 = vld [vmem:[#allocation6 + $0x30] sm:$0xff]
    %v102 = vld [vmem:[#allocation6 + $0x38] sm:$0xff]
    %v103 = vld [vmem:[#allocation6 + $0x40] sm:$0xff]
    %v104 = vld [vmem:[#allocation6 + $0x48] sm:$0xff]
    %v105 = vld [vmem:[#allocation6 + $0x50] sm:$0xff]
    %v106 = vld [vmem:[#allocation6 + $0x58] sm:$0xff]
    %v107 = vld [vmem:[#allocation6 + $0x60] sm:$0xff]
    %v108 = vld [vmem:[#allocation6 + $0x68] sm:$0xff]
    %v109 = vld [vmem:[#allocation6 + $0x70] sm:$0xff]
    %v110 = vld [vmem:[#allocation6 + $0x78] sm:$0xff]
    %v111 = vld [vmem:[#allocation6 + $0x80] sm:$0xff]
    %v112 = vld [vmem:[#allocation6 + $0x88] sm:$0xff]
    %v113 = vld [vmem:[#allocation6 + $0x90] sm:$0xff]
    %v114 = vld [vmem:[#allocation6 + $0x98] sm:$0xff]
    %v115 = vld [vmem:[#allocation6 + $0xa0] sm:$0xff]
    %v116 = vld [vmem:[#allocation6 + $0xa8] sm:$0xff]
    %v117 = vld [vmem:[#allocation6 + $0xb0] sm:$0xff]
    %v118 = vld [vmem:[#allocation6 + $0xb8] sm:$0xff]
    %v119 = vld [vmem:[#allocation6 + $0xc0] sm:$0xff]
    %v120 = vld [vmem:[#allocation6 + $0xc8] sm:$0xff]
    %v121 = vld [vmem:[#allocation6 + $0xd0] sm:$0xff]
    %v122 = vld [vmem:[#allocation6 + $0xd8] sm:$0xff]
    %v123 = vld [vmem:[#allocation6 + $0xe0] sm:$0xff]
    %v124 = vld [vmem:[#allocation6 + $0xe8] sm:$0xff]
    %v125 = vld [vmem:[#allocation6 + $0xf0] sm:$0xff]
    %v126 = vld [vmem:[#allocation6 + $0xf8] sm:$0xff]
    %v127 = vld [vmem:[#allocation6 + $0x100] sm:$0xff]
    %v128 = vld [vmem:[#allocation6 + $0x108] sm:$0xff]
    %v129 = vld [vmem:[#allocation6 + $0x110] sm:$0xff]
    %v130 = vld [vmem:[#allocation6 + $0x118] sm:$0xff]
    %v131 = vld [vmem:[#allocation6 + $0x120] sm:$0xff]
    %v132 = vld [vmem:[#allocation6 + $0x128] sm:$0xff]
    %v133 = vld [vmem:[#allocation6 + $0x130] sm:$0xff]
    %v134 = vld [vmem:[#allocation6 + $0x138] sm:$0xff]
    %v135 = vld [vmem:[#allocation6 + $0x140] sm:$0xff]
    %v136 = vld [vmem:[#allocation6 + $0x148] sm:$0xff]
    %v137 = vld [vmem:[#allocation6 + $0x150] sm:$0xff]
    %v138 = vld [vmem:[#allocation6 + $0x158] sm:$0xff]
    %v139 = vld [vmem:[#allocation6 + $0x160] sm:$0xff]
    %v140 = vld [vmem:[#allocation6 + $0x168] sm:$0xff]
    %v141 = vld [vmem:[#allocation6 + $0x170] sm:$0xff]
    %v142 = vld [vmem:[#allocation6 + $0x178] sm:$0xff]
    %v143 = vld [vmem:[#allocation6 + $0x180] sm:$0xff]
    %v144 = vld [vmem:[#allocation6 + $0x188] sm:$0xff]
    %v145 = vld [vmem:[#allocation6 + $0x190] sm:$0xff]
    %v146 = vld [vmem:[#allocation6 + $0x198] sm:$0xff]
    %v147 = vld [vmem:[#allocation6 + $0x1a0] sm:$0xff]
    %v148 = vld [vmem:[#allocation6 + $0x1a8] sm:$0xff]
    %v149 = vld [vmem:[#allocation6 + $0x1b0] sm:$0xff]
    %v150 = vld [vmem:[#allocation6 + $0x1b8] sm:$0xff]
    %v151 = vld [vmem:[#allocation6 + $0x1c0] sm:$0xff]
    %v152 = vld [vmem:[#allocation6 + $0x1c8] sm:$0xff]
    %v153 = vld [vmem:[#allocation6 + $0x1d0] sm:$0xff]
    %v154 = vld [vmem:[#allocation6 + $0x1d8] sm:$0xff]
    %v155 = vld [vmem:[#allocation6 + $0x1e0] sm:$0xff]
    %v156 = vld [vmem:[#allocation6 + $0x1e8] sm:$0xff]
    %v157 = vld [vmem:[#allocation6 + $0x1f0] sm:$0xff]
    %v158 = vld [vmem:[#allocation6 + $0x1f8] sm:$0xff]
    %v159 = vld [vmem:[%s3] sm:$0xf]
    %v161 = vlaneseq
    %v162 = vshrl.u32 %v161, 7
    %v163 = vsub.s32 0, %v162
    %v164 = vrot.slane %v159, %v163
    %v165 = vlaneseq
    %v166 = vshrl.u32 %v165, 7
    %v167 = vsub.s32 1, %v166
    %v168 = vrot.slane %v159, %v167
    %v169 = vlaneseq
    %v170 = vshrl.u32 %v169, 7
    %v171 = vsub.s32 2, %v170
    %v172 = vrot.slane %v159, %v171
    %v173 = vlaneseq
    %v174 = vshrl.u32 %v173, 7
    %v175 = vsub.s32 3, %v174
    %v176 = vrot.slane %v159, %v175
    %181 = vmatprep.subr.mxu0 %v96
    %182 = vmatpush1.msra.mxu0 %v95
    %183 = vmatprep.subr.mxu0 %v100
    %184 = vmatpush1.msra.mxu0 %v99
    %185 = vmatprep.subr.mxu0 %v104
    %186 = vmatpush1.msra.mxu0 %v103
    %187 = vmatprep.subr.mxu0 %v108
    %188 = vmatpush1.msra.mxu0 %v107
    %189 = vmatprep.subr.mxu0 %v112
    %190 = vmatpush1.msra.mxu0 %v111
    %191 = vmatprep.subr.mxu0 %v116
    %192 = vmatpush1.msra.mxu0 %v115
    %193 = vmatprep.subr.mxu0 %v120
    %194 = vmatpush1.msra.mxu0 %v119
    %195 = vmatprep.subr.mxu0 %v124
    %196 = vmatpush1.msra.mxu0 %v123
    %197 = vmatprep.subr.mxu0 %v128
    %198 = vmatpush1.msra.mxu0 %v127
    %199 = vmatprep.subr.mxu0 %v132
    %200 = vmatpush1.msra.mxu0 %v131
    %201 = vmatprep.subr.mxu0 %v136
    %202 = vmatpush1.msra.mxu0 %v135
    %203 = vmatprep.subr.mxu0 %v140
    %204 = vmatpush1.msra.mxu0 %v139
    %205 = vmatprep.subr.mxu0 %v144
    %206 = vmatpush1.msra.mxu0 %v143
    %207 = vmatprep.subr.mxu0 %v148
    %208 = vmatpush1.msra.mxu0 %v147
    %209 = vmatprep.subr.mxu0 %v152
    %210 = vmatpush1.msra.mxu0 %v151
    %211 = vmatprep.subr.mxu0 %v156
    %212 = vmatpush1.msra.mxu0 %v155
    %213 = vmatprep.subr.mxu0 0.0
    %214 = vmatpush1.msra.mxu0 0.0
    %215 = vmatprep.subr.mxu0 0.0
    %216 = vmatpush1.msra.mxu0 0.0
    %217 = vmatprep.subr.mxu0 0.0
    %218 = vmatpush1.msra.mxu0 0.0
    %219 = vmatprep.subr.mxu0 0.0
    %220 = vmatpush1.msra.mxu0 0.0
    %221 = vmatprep.subr.mxu0 0.0
    %222 = vmatpush1.msra.mxu0 0.0
    %223 = vmatprep.subr.mxu0 0.0
    %224 = vmatpush1.msra.mxu0 0.0
    %225 = vmatprep.subr.mxu0 0.0
    %226 = vmatpush1.msra.mxu0 0.0
    %227 = vmatprep.subr.mxu0 0.0
    %228 = vmatpush1.msra.mxu0 0.0
    %229 = vmatprep.subr.mxu0 0.0
    %230 = vmatpush1.msra.mxu0 0.0
    %231 = vmatprep.subr.mxu0 0.0
    %232 = vmatpush1.msra.mxu0 0.0
    %233 = vmatprep.subr.mxu0 0.0
    %234 = vmatpush1.msra.mxu0 0.0
    %235 = vmatprep.subr.mxu0 0.0
    %236 = vmatpush1.msra.mxu0 0.0
    %237 = vmatprep.subr.mxu0 0.0
    %238 = vmatpush1.msra.mxu0 0.0
    %239 = vmatprep.subr.mxu0 0.0
    %240 = vmatpush1.msra.mxu0 0.0
    %241 = vmatprep.subr.mxu0 0.0
    %242 = vmatpush1.msra.mxu0 0.0
    %243 = vmatprep.subr.mxu0 0.0
    %244 = vmatpush1.msra.mxu0 0.0
    %245 = vmatprep.mubr.f32.mxu0 0.0
    %246 = vmatmul.mubr.f32.gmra.mrb[0].mxu0 %v79
    %v247 = vpop.f32.mrb[0].mxu0
    %v248 = vadd.f32 %v164, %v247
    %v249 = vpop.f32.mrb[0].mxu0
    %v250 = vadd.f32 %v168, %v249
    %251 = vmatprep.mubr.f32.mxu0 0.0
    %252 = vmatmul.mubr.f32.gmra.mrb[0].mxu0 %v80
    %v253 = vpop.f32.mrb[0].mxu0
    %v254 = vadd.f32 %v164, %v253
    %v255 = vpop.f32.mrb[0].mxu0
    %v256 = vadd.f32 %v168, %v255
    %257 = vmatprep.mubr.f32.mxu0 0.0
    %258 = vmatmul.mubr.f32.gmra.mrb[0].mxu0 %v81
    %v259 = vpop.f32.mrb[0].mxu0
    %v260 = vadd.f32 %v164, %v259
    %v261 = vpop.f32.mrb[0].mxu0
    %v262 = vadd.f32 %v168, %v261
    %263 = vmatprep.mubr.f32.mxu0 0.0
    %264 = vmatmul.mubr.f32.gmra.mrb[0].mxu0 %v82
    %v265 = vpop.f32.mrb[0].mxu0
    %v266 = vadd.f32 %v164, %v265
    %v267 = vpop.f32.mrb[0].mxu0
    %v268 = vadd.f32 %v168, %v267
    %269 = vmatprep.mubr.f32.mxu0 0.0
    %270 = vmatmul.mubr.f32.gmra.mrb[0].mxu0 %v83
    %v271 = vpop.f32.mrb[0].mxu0
    %v272 = vadd.f32 %v164, %v271
    %v273 = vpop.f32.mrb[0].mxu0
    %v274 = vadd.f32 %v168, %v273
    %275 = vmatprep.mubr.f32.mxu0 0.0
    %276 = vmatmul.mubr.f32.gmra.mrb[0].mxu0 %v84
    %v277 = vpop.f32.mrb[0].mxu0
    %v278 = vadd.f32 %v164, %v277
    %v279 = vpop.f32.mrb[0].mxu0
    %v280 = vadd.f32 %v168, %v279
    %281 = vmatprep.mubr.f32.mxu0 0.0
    %282 = vmatmul.mubr.f32.gmra.mrb[0].mxu0 %v85
    %v283 = vpop.f32.mrb[0].mxu0
    %v284 = vadd.f32 %v164, %v283
    %v285 = vpop.f32.mrb[0].mxu0
    %v286 = vadd.f32 %v168, %v285
    %287 = vmatprep.mubr.f32.mxu0 0.0
    %288 = vmatmul.mubr.f32.gmra.mrb[0].mxu0 %v86
    %v289 = vpop.f32.mrb[0].mxu0
    %v290 = vadd.f32 %v164, %v289
    %v291 = vpop.f32.mrb[0].mxu0
    %v292 = vadd.f32 %v168, %v291
    %293 = vmatprep.mubr.f32.mxu0 0.0
    %294 = vmatmul.mubr.f32.gmra.mrb[0].mxu0 %v87
    %v295 = vpop.f32.mrb[0].mxu0
    %v296 = vadd.f32 %v164, %v295
    %v297 = vpop.f32.mrb[0].mxu0
    %v298 = vadd.f32 %v168, %v297
    %299 = vmatprep.mubr.f32.mxu0 0.0
    %300 = vmatmul.mubr.f32.gmra.mrb[0].mxu0 %v88
    %v301 = vpop.f32.mrb[0].mxu0
    %v302 = vadd.f32 %v164, %v301
    %v303 = vpop.f32.mrb[0].mxu0
    %v304 = vadd.f32 %v168, %v303
    %305 = vmatprep.mubr.f32.mxu0 0.0
    %306 = vmatmul.mubr.f32.gmra.mrb[0].mxu0 %v89
    %v307 = vpop.f32.mrb[0].mxu0
    %v308 = vadd.f32 %v164, %v307
    %v309 = vpop.f32.mrb[0].mxu0
    %v310 = vadd.f32 %v168, %v309
    %311 = vmatprep.mubr.f32.mxu0 0.0
    %312 = vmatmul.mubr.f32.gmra.mrb[0].mxu0 %v90
    %v313 = vpop.f32.mrb[0].mxu0
    %v314 = vadd.f32 %v164, %v313
    %v315 = vpop.f32.mrb[0].mxu0
    %v316 = vadd.f32 %v168, %v315
    %317 = vmatprep.mubr.f32.mxu0 0.0
    %318 = vmatmul.mubr.f32.gmra.mrb[0].mxu0 %v91
    %v319 = vpop.f32.mrb[0].mxu0
    %v320 = vadd.f32 %v164, %v319
    %v321 = vpop.f32.mrb[0].mxu0
    %v322 = vadd.f32 %v168, %v321
    %323 = vmatprep.mubr.f32.mxu0 0.0
    %324 = vmatmul.mubr.f32.gmra.mrb[0].mxu0 %v92
    %v325 = vpop.f32.mrb[0].mxu0
    %v326 = vadd.f32 %v164, %v325
    %v327 = vpop.f32.mrb[0].mxu0
    %v328 = vadd.f32 %v168, %v327
    %329 = vmatprep.mubr.f32.mxu0 0.0
    %330 = vmatmul.mubr.f32.gmra.mrb[0].mxu0 %v93
    %v331 = vpop.f32.mrb[0].mxu0
    %v332 = vadd.f32 %v164, %v331
    %v333 = vpop.f32.mrb[0].mxu0
    %v334 = vadd.f32 %v168, %v333
    %335 = vmatprep.mubr.f32.mxu0 0.0
    %336 = vmatmul.mubr.f32.gmra.mrb[0].mxu0 %v94
    %v337 = vpop.f32.mrb[0].mxu0
    %v338 = vadd.f32 %v164, %v337
    %v339 = vpop.f32.mrb[0].mxu0
    %v340 = vadd.f32 %v168, %v339
    %341 = vdwg.mxu0
    %342 = vmatprep.subr.mxu0 %v98
    %343 = vmatpush1.msra.mxu0 %v97
    %344 = vmatprep.subr.mxu0 %v102
    %345 = vmatpush1.msra.mxu0 %v101
    %346 = vmatprep.subr.mxu0 %v106
    %347 = vmatpush1.msra.mxu0 %v105
    %348 = vmatprep.subr.mxu0 %v110
    %349 = vmatpush1.msra.mxu0 %v109
    %350 = vmatprep.subr.mxu0 %v114
    %351 = vmatpush1.msra.mxu0 %v113
    %352 = vmatprep.subr.mxu0 %v118
    %353 = vmatpush1.msra.mxu0 %v117
    %354 = vmatprep.subr.mxu0 %v122
    %355 = vmatpush1.msra.mxu0 %v121
    %356 = vmatprep.subr.mxu0 %v126
    %357 = vmatpush1.msra.mxu0 %v125
    %358 = vmatprep.subr.mxu0 %v130
    %359 = vmatpush1.msra.mxu0 %v129
    %360 = vmatprep.subr.mxu0 %v134
    %361 = vmatpush1.msra.mxu0 %v133
    %362 = vmatprep.subr.mxu0 %v138
    %363 = vmatpush1.msra.mxu0 %v137
    %364 = vmatprep.subr.mxu0 %v142
    %365 = vmatpush1.msra.mxu0 %v141
    %366 = vmatprep.subr.mxu0 %v146
    %367 = vmatpush1.msra.mxu0 %v145
    %368 = vmatprep.subr.mxu0 %v150
    %369 = vmatpush1.msra.mxu0 %v149
    %370 = vmatprep.subr.mxu0 %v154
    %371 = vmatpush1.msra.mxu0 %v153
    %372 = vmatprep.subr.mxu0 %v158
    %373 = vmatpush1.msra.mxu0 %v157
    %374 = vmatprep.subr.mxu0 0.0
    %375 = vmatpush1.msra.mxu0 0.0
    %376 = vmatprep.subr.mxu0 0.0
    %377 = vmatpush1.msra.mxu0 0.0
    %378 = vmatprep.subr.mxu0 0.0
    %379 = vmatpush1.msra.mxu0 0.0
    %380 = vmatprep.subr.mxu0 0.0
    %381 = vmatpush1.msra.mxu0 0.0
    %382 = vmatprep.subr.mxu0 0.0
    %383 = vmatpush1.msra.mxu0 0.0
    %384 = vmatprep.subr.mxu0 0.0
    %385 = vmatpush1.msra.mxu0 0.0
    %386 = vmatprep.subr.mxu0 0.0
    %387 = vmatpush1.msra.mxu0 0.0
    %388 = vmatprep.subr.mxu0 0.0
    %389 = vmatpush1.msra.mxu0 0.0
    %390 = vmatprep.subr.mxu0 0.0
    %391 = vmatpush1.msra.mxu0 0.0
    %392 = vmatprep.subr.mxu0 0.0
    %393 = vmatpush1.msra.mxu0 0.0
    %394 = vmatprep.subr.mxu0 0.0
    %395 = vmatpush1.msra.mxu0 0.0
    %396 = vmatprep.subr.mxu0 0.0
    %397 = vmatpush1.msra.mxu0 0.0
    %398 = vmatprep.subr.mxu0 0.0
    %399 = vmatpush1.msra.mxu0 0.0
    %400 = vmatprep.subr.mxu0 0.0
    %401 = vmatpush1.msra.mxu0 0.0
    %402 = vmatprep.subr.mxu0 0.0
    %403 = vmatpush1.msra.mxu0 0.0
    %404 = vmatprep.subr.mxu0 0.0
    %405 = vmatpush1.msra.mxu0 0.0
    %406 = vmatprep.mubr.f32.mxu0 0.0
    %407 = vmatmul.mubr.f32.gmra.mrb[0].mxu0 %v79
    %v408 = vpop.f32.mrb[0].mxu0
    %v409 = vadd.f32 %v172, %v408
    %v410 = vpop.f32.mrb[0].mxu0
    %v411 = vadd.f32 %v176, %v410
    %412 = vmatprep.mubr.f32.mxu0 0.0
    %413 = vmatmul.mubr.f32.gmra.mrb[0].mxu0 %v80
    %v414 = vpop.f32.mrb[0].mxu0
    %v415 = vadd.f32 %v172, %v414
    %v416 = vpop.f32.mrb[0].mxu0
    %v417 = vadd.f32 %v176, %v416
    %418 = vmatprep.mubr.f32.mxu0 0.0
    %419 = vmatmul.mubr.f32.gmra.mrb[0].mxu0 %v81
    %v420 = vpop.f32.mrb[0].mxu0
    %v421 = vadd.f32 %v172, %v420
    %v422 = vpop.f32.mrb[0].mxu0
    %v423 = vadd.f32 %v176, %v422
    %424 = vmatprep.mubr.f32.mxu0 0.0
    %425 = vmatmul.mubr.f32.gmra.mrb[0].mxu0 %v82
    %v426 = vpop.f32.mrb[0].mxu0
    %v427 = vadd.f32 %v172, %v426
    %v428 = vpop.f32.mrb[0].mxu0
    %v429 = vadd.f32 %v176, %v428
    %430 = vmatprep.mubr.f32.mxu0 0.0
    %431 = vmatmul.mubr.f32.gmra.mrb[0].mxu0 %v83
    %v432 = vpop.f32.mrb[0].mxu0
    %v433 = vadd.f32 %v172, %v432
    %v434 = vpop.f32.mrb[0].mxu0
    %v435 = vadd.f32 %v176, %v434
    %436 = vmatprep.mubr.f32.mxu0 0.0
    %437 = vmatmul.mubr.f32.gmra.mrb[0].mxu0 %v84
    %v438 = vpop.f32.mrb[0].mxu0
    %v439 = vadd.f32 %v172, %v438
    %v440 = vpop.f32.mrb[0].mxu0
    %v441 = vadd.f32 %v176, %v440
    %442 = vmatprep.mubr.f32.mxu0 0.0
    %443 = vmatmul.mubr.f32.gmra.mrb[0].mxu0 %v85
    %v444 = vpop.f32.mrb[0].mxu0
    %v445 = vadd.f32 %v172, %v444
    %v446 = vpop.f32.mrb[0].mxu0
    %v447 = vadd.f32 %v176, %v446
    %448 = vmatprep.mubr.f32.mxu0 0.0
    %449 = vmatmul.mubr.f32.gmra.mrb[0].mxu0 %v86
    %v450 = vpop.f32.mrb[0].mxu0
    %v451 = vadd.f32 %v172, %v450
    %v452 = vpop.f32.mrb[0].mxu0
    %v453 = vadd.f32 %v176, %v452
    %454 = vmatprep.mubr.f32.mxu0 0.0
    %455 = vmatmul.mubr.f32.gmra.mrb[0].mxu0 %v87
    %v456 = vpop.f32.mrb[0].mxu0
    %v457 = vadd.f32 %v172, %v456
    %v458 = vpop.f32.mrb[0].mxu0
    %v459 = vadd.f32 %v176, %v458
    %460 = vmatprep.mubr.f32.mxu0 0.0
    %461 = vmatmul.mubr.f32.gmra.mrb[0].mxu0 %v88
    %v462 = vpop.f32.mrb[0].mxu0
    %v463 = vadd.f32 %v172, %v462
    %v464 = vpop.f32.mrb[0].mxu0
    %v465 = vadd.f32 %v176, %v464
    %466 = vmatprep.mubr.f32.mxu0 0.0
    %467 = vmatmul.mubr.f32.gmra.mrb[0].mxu0 %v89
    %v468 = vpop.f32.mrb[0].mxu0
    %v469 = vadd.f32 %v172, %v468
    %v470 = vpop.f32.mrb[0].mxu0
    %v471 = vadd.f32 %v176, %v470
    %472 = vmatprep.mubr.f32.mxu0 0.0
    %473 = vmatmul.mubr.f32.gmra.mrb[0].mxu0 %v90
    %v474 = vpop.f32.mrb[0].mxu0
    %v475 = vadd.f32 %v172, %v474
    %v476 = vpop.f32.mrb[0].mxu0
    %v477 = vadd.f32 %v176, %v476
    %478 = vmatprep.mubr.f32.mxu0 0.0
    %479 = vmatmul.mubr.f32.gmra.mrb[0].mxu0 %v91
    %v480 = vpop.f32.mrb[0].mxu0
    %v481 = vadd.f32 %v172, %v480
    %v482 = vpop.f32.mrb[0].mxu0
    %v483 = vadd.f32 %v176, %v482
    %484 = vmatprep.mubr.f32.mxu0 0.0
    %485 = vmatmul.mubr.f32.gmra.mrb[0].mxu0 %v92
    %v486 = vpop.f32.mrb[0].mxu0
    %v487 = vadd.f32 %v172, %v486
    %v488 = vpop.f32.mrb[0].mxu0
    %v489 = vadd.f32 %v176, %v488
    %490 = vmatprep.mubr.f32.mxu0 0.0
    %491 = vmatmul.mubr.f32.gmra.mrb[0].mxu0 %v93
    %v492 = vpop.f32.mrb[0].mxu0
    %v493 = vadd.f32 %v172, %v492
    %v494 = vpop.f32.mrb[0].mxu0
    %v495 = vadd.f32 %v176, %v494
    %496 = vmatprep.mubr.f32.mxu0 0.0
    %497 = vmatmul.mubr.f32.gmra.mrb[0].mxu0 %v94
    %v498 = vpop.f32.mrb[0].mxu0
    %v499 = vadd.f32 %v172, %v498
    %v500 = vpop.f32.mrb[0].mxu0
    %v501 = vadd.f32 %v176, %v500
    %502 = vdwg.mxu0
    %503 = vst [vmem:[#allocation2] sm:$0xff] %v248
    %504 = vst [vmem:[#allocation2 + $0x8] sm:$0xff] %v250
    %505 = vst [vmem:[#allocation2 + $0x10] sm:$0xff] %v409
    %506 = vst [vmem:[#allocation2 + $0x18] sm:$0xff] %v411
    %507 = vst [vmem:[#allocation2 + $0x20] sm:$0xff] %v254
    %508 = vst [vmem:[#allocation2 + $0x28] sm:$0xff] %v256
    %509 = vst [vmem:[#allocation2 + $0x30] sm:$0xff] %v415
    %510 = vst [vmem:[#allocation2 + $0x38] sm:$0xff] %v417
    %511 = vst [vmem:[#allocation2 + $0x40] sm:$0xff] %v260
    %512 = vst [vmem:[#allocation2 + $0x48] sm:$0xff] %v262
    %513 = vst [vmem:[#allocation2 + $0x50] sm:$0xff] %v421
    %514 = vst [vmem:[#allocation2 + $0x58] sm:$0xff] %v423
    %515 = vst [vmem:[#allocation2 + $0x60] sm:$0xff] %v266
    %516 = vst [vmem:[#allocation2 + $0x68] sm:$0xff] %v268
    %517 = vst [vmem:[#allocation2 + $0x70] sm:$0xff] %v427
    %518 = vst [vmem:[#allocation2 + $0x78] sm:$0xff] %v429
    %519 = vst [vmem:[#allocation2 + $0x80] sm:$0xff] %v272
    %520 = vst [vmem:[#allocation2 + $0x88] sm:$0xff] %v274
    %521 = vst [vmem:[#allocation2 + $0x90] sm:$0xff] %v433
    %522 = vst [vmem:[#allocation2 + $0x98] sm:$0xff] %v435
    %523 = vst [vmem:[#allocation2 + $0xa0] sm:$0xff] %v278
    %524 = vst [vmem:[#allocation2 + $0xa8] sm:$0xff] %v280
    %525 = vst [vmem:[#allocation2 + $0xb0] sm:$0xff] %v439
    %526 = vst [vmem:[#allocation2 + $0xb8] sm:$0xff] %v441
    %527 = vst [vmem:[#allocation2 + $0xc0] sm:$0xff] %v284
    %528 = vst [vmem:[#allocation2 + $0xc8] sm:$0xff] %v286
    %529 = vst [vmem:[#allocation2 + $0xd0] sm:$0xff] %v445
    %530 = vst [vmem:[#allocation2 + $0xd8] sm:$0xff] %v447
    %531 = vst [vmem:[#allocation2 + $0xe0] sm:$0xff] %v290
    %532 = vst [vmem:[#allocation2 + $0xe8] sm:$0xff] %v292
    %533 = vst [vmem:[#allocation2 + $0xf0] sm:$0xff] %v451
    %534 = vst [vmem:[#allocation2 + $0xf8] sm:$0xff] %v453
    %535 = vst [vmem:[#allocation2 + $0x100] sm:$0xff] %v296
    %536 = vst [vmem:[#allocation2 + $0x108] sm:$0xff] %v298
    %537 = vst [vmem:[#allocation2 + $0x110] sm:$0xff] %v457
    %538 = vst [vmem:[#allocation2 + $0x118] sm:$0xff] %v459
    %539 = vst [vmem:[#allocation2 + $0x120] sm:$0xff] %v302
    %540 = vst [vmem:[#allocation2 + $0x128] sm:$0xff] %v304
    %541 = vst [vmem:[#allocation2 + $0x130] sm:$0xff] %v463
    %542 = vst [vmem:[#allocation2 + $0x138] sm:$0xff] %v465
    %543 = vst [vmem:[#allocation2 + $0x140] sm:$0xff] %v308
    %544 = vst [vmem:[#allocation2 + $0x148] sm:$0xff] %v310
    %545 = vst [vmem:[#allocation2 + $0x150] sm:$0xff] %v469
    %546 = vst [vmem:[#allocation2 + $0x158] sm:$0xff] %v471
    %547 = vst [vmem:[#allocation2 + $0x160] sm:$0xff] %v314
    %548 = vst [vmem:[#allocation2 + $0x168] sm:$0xff] %v316
    %549 = vst [vmem:[#allocation2 + $0x170] sm:$0xff] %v475
    %550 = vst [vmem:[#allocation2 + $0x178] sm:$0xff] %v477
    %551 = vst [vmem:[#allocation2 + $0x180] sm:$0xff] %v320
    %552 = vst [vmem:[#allocation2 + $0x188] sm:$0xff] %v322
    %553 = vst [vmem:[#allocation2 + $0x190] sm:$0xff] %v481
    %554 = vst [vmem:[#allocation2 + $0x198] sm:$0xff] %v483
    %555 = vst [vmem:[#allocation2 + $0x1a0] sm:$0xff] %v326
    %556 = vst [vmem:[#allocation2 + $0x1a8] sm:$0xff] %v328
    %557 = vst [vmem:[#allocation2 + $0x1b0] sm:$0xff] %v487
    %558 = vst [vmem:[#allocation2 + $0x1b8] sm:$0xff] %v489
    %559 = vst [vmem:[#allocation2 + $0x1c0] sm:$0xff] %v332
    %560 = vst [vmem:[#allocation2 + $0x1c8] sm:$0xff] %v334
    %561 = vst [vmem:[#allocation2 + $0x1d0] sm:$0xff] %v493
    %562 = vst [vmem:[#allocation2 + $0x1d8] sm:$0xff] %v495
    %563 = vst [vmem:[#allocation2 + $0x1e0] sm:$0xff] %v338
    %564 = vst [vmem:[#allocation2 + $0x1e8] sm:$0xff] %v340
    %565 = vst [vmem:[#allocation2 + $0x1f0] sm:$0xff] %v499
    %566 = vst [vmem:[#allocation2 + $0x1f8] sm:$0xff] %v501
    %v567 = vld [vmem:[#allocation2] sm:$0xff]
    %v568 = vld [vmem:[#allocation2 + $0x8] sm:$0xff]
    %v569 = vld [vmem:[#allocation2 + $0x10] sm:$0xff]
    %v570 = vld [vmem:[#allocation2 + $0x18] sm:$0xff]
    %v571 = vld [vmem:[#allocation2 + $0x20] sm:$0xff]
    %v572 = vld [vmem:[#allocation2 + $0x28] sm:$0xff]
    %v573 = vld [vmem:[#allocation2 + $0x30] sm:$0xff]
    %v574 = vld [vmem:[#allocation2 + $0x38] sm:$0xff]
    %v575 = vld [vmem:[#allocation8] sm:$0xff]
    %v576 = vld [vmem:[#allocation8 + $0x8] sm:$0xff]
    %v577 = vld [vmem:[#allocation8 + $0x10] sm:$0xff]
    %v578 = vld [vmem:[#allocation8 + $0x18] sm:$0xff]
    %v579 = vld [vmem:[#allocation8 + $0x20] sm:$0xff]
    %v580 = vld [vmem:[#allocation8 + $0x28] sm:$0xff]
    %v581 = vld [vmem:[#allocation8 + $0x30] sm:$0xff]
    %v582 = vld [vmem:[#allocation8 + $0x38] sm:$0xff]
    %v583 = vld [vmem:[#allocation8 + $0x40] sm:$0xff]
    %v584 = vld [vmem:[#allocation8 + $0x48] sm:$0xff]
    %v585 = vld [vmem:[#allocation8 + $0x50] sm:$0xff]
    %v586 = vld [vmem:[#allocation8 + $0x58] sm:$0xff]
    %v587 = vld [vmem:[#allocation8 + $0x60] sm:$0xff]
    %v588 = vld [vmem:[#allocation8 + $0x68] sm:$0xff]
    %v589 = vld [vmem:[#allocation8 + $0x70] sm:$0xff]
    %v590 = vld [vmem:[#allocation8 + $0x78] sm:$0xff]
    %v591 = vld [vmem:[#allocation8 + $0x80] sm:$0xff]
    %v592 = vld [vmem:[#allocation8 + $0x88] sm:$0xff]
    %v593 = vld [vmem:[#allocation8 + $0x90] sm:$0xff]
    %v594 = vld [vmem:[#allocation8 + $0x98] sm:$0xff]
    %v595 = vld [vmem:[#allocation8 + $0xa0] sm:$0xff]
    %v596 = vld [vmem:[#allocation8 + $0xa8] sm:$0xff]
    %v597 = vld [vmem:[#allocation8 + $0xb0] sm:$0xff]
    %v598 = vld [vmem:[#allocation8 + $0xb8] sm:$0xff]
    %v599 = vld [vmem:[#allocation8 + $0xc0] sm:$0xff]
    %v600 = vld [vmem:[#allocation8 + $0xc8] sm:$0xff]
    %v601 = vld [vmem:[#allocation8 + $0xd0] sm:$0xff]
    %v602 = vld [vmem:[#allocation8 + $0xd8] sm:$0xff]
    %v603 = vld [vmem:[#allocation8 + $0xe0] sm:$0xff]
    %v604 = vld [vmem:[#allocation8 + $0xe8] sm:$0xff]
    %v605 = vld [vmem:[#allocation8 + $0xf0] sm:$0xff]
    %v606 = vld [vmem:[#allocation8 + $0xf8] sm:$0xff]
    %v607 = vld [vmem:[#allocation8 + $0x100] sm:$0xff]
    %v608 = vld [vmem:[#allocation8 + $0x108] sm:$0xff]
    %v609 = vld [vmem:[#allocation8 + $0x110] sm:$0xff]
    %v610 = vld [vmem:[#allocation8 + $0x118] sm:$0xff]
    %v611 = vld [vmem:[#allocation8 + $0x120] sm:$0xff]
    %v612 = vld [vmem:[#allocation8 + $0x128] sm:$0xff]
    %v613 = vld [vmem:[#allocation8 + $0x130] sm:$0xff]
    %v614 = vld [vmem:[#allocation8 + $0x138] sm:$0xff]
    %v615 = vld [vmem:[#allocation8 + $0x140] sm:$0xff]
    %v616 = vld [vmem:[#allocation8 + $0x148] sm:$0xff]
    %v617 = vld [vmem:[#allocation8 + $0x150] sm:$0xff]
    %v618 = vld [vmem:[#allocation8 + $0x158] sm:$0xff]
    %v619 = vld [vmem:[#allocation8 + $0x160] sm:$0xff]
    %v620 = vld [vmem:[#allocation8 + $0x168] sm:$0xff]
    %v621 = vld [vmem:[#allocation8 + $0x170] sm:$0xff]
    %v622 = vld [vmem:[#allocation8 + $0x178] sm:$0xff]
    %v623 = vld [vmem:[#allocation8 + $0x180] sm:$0xff]
    %v624 = vld [vmem:[#allocation8 + $0x188] sm:$0xff]
    %v625 = vld [vmem:[#allocation8 + $0x190] sm:$0xff]
    %v626 = vld [vmem:[#allocation8 + $0x198] sm:$0xff]
    %v627 = vld [vmem:[#allocation8 + $0x1a0] sm:$0xff]
    %v628 = vld [vmem:[#allocation8 + $0x1a8] sm:$0xff]
    %v629 = vld [vmem:[#allocation8 + $0x1b0] sm:$0xff]
    %v630 = vld [vmem:[#allocation8 + $0x1b8] sm:$0xff]
    %v631 = vld [vmem:[#allocation8 + $0x1c0] sm:$0xff]
    %v632 = vld [vmem:[#allocation8 + $0x1c8] sm:$0xff]
    %v633 = vld [vmem:[#allocation8 + $0x1d0] sm:$0xff]
    %v634 = vld [vmem:[#allocation8 + $0x1d8] sm:$0xff]
    %v635 = vld [vmem:[#allocation8 + $0x1e0] sm:$0xff]
    %v636 = vld [vmem:[#allocation8 + $0x1e8] sm:$0xff]
    %v637 = vld [vmem:[#allocation8 + $0x1f0] sm:$0xff]
    %v638 = vld [vmem:[#allocation8 + $0x1f8] sm:$0xff]
    %639 = vmatprep.subr.mxu0 %v576
    %640 = vmatpush1.msra.mxu0 %v575
    %641 = vmatprep.subr.mxu0 %v580
    %642 = vmatpush1.msra.mxu0 %v579
    %643 = vmatprep.subr.mxu0 %v584
    %644 = vmatpush1.msra.mxu0 %v583
    %645 = vmatprep.subr.mxu0 %v588
    %646 = vmatpush1.msra.mxu0 %v587
    %647 = vmatprep.subr.mxu0 %v592
    %648 = vmatpush1.msra.mxu0 %v591
    %649 = vmatprep.subr.mxu0 %v596
    %650 = vmatpush1.msra.mxu0 %v595
    %651 = vmatprep.subr.mxu0 %v600
    %652 = vmatpush1.msra.mxu0 %v599
    %653 = vmatprep.subr.mxu0 %v604
    %654 = vmatpush1.msra.mxu0 %v603
    %655 = vmatprep.subr.mxu0 %v608
    %656 = vmatpush1.msra.mxu0 %v607
    %657 = vmatprep.subr.mxu0 %v612
    %658 = vmatpush1.msra.mxu0 %v611
    %659 = vmatprep.subr.mxu0 %v616
    %660 = vmatpush1.msra.mxu0 %v615
    %661 = vmatprep.subr.mxu0 %v620
    %662 = vmatpush1.msra.mxu0 %v619
    %663 = vmatprep.subr.mxu0 %v624
    %664 = vmatpush1.msra.mxu0 %v623
    %665 = vmatprep.subr.mxu0 %v628
    %666 = vmatpush1.msra.mxu0 %v627
    %667 = vmatprep.subr.mxu0 %v632
    %668 = vmatpush1.msra.mxu0 %v631
    %669 = vmatprep.subr.mxu0 %v636
    %670 = vmatpush1.msra.mxu0 %v635
    %671 = vmatprep.subr.mxu0 0.0
    %672 = vmatpush1.msra.mxu0 0.0
    %673 = vmatprep.subr.mxu0 0.0
    %674 = vmatpush1.msra.mxu0 0.0
    %675 = vmatprep.subr.mxu0 0.0
    %676 = vmatpush1.msra.mxu0 0.0
    %677 = vmatprep.subr.mxu0 0.0
    %678 = vmatpush1.msra.mxu0 0.0
    %679 = vmatprep.subr.mxu0 0.0
    %680 = vmatpush1.msra.mxu0 0.0
    %681 = vmatprep.subr.mxu0 0.0
    %682 = vmatpush1.msra.mxu0 0.0
    %683 = vmatprep.subr.mxu0 0.0
    %684 = vmatpush1.msra.mxu0 0.0
    %685 = vmatprep.subr.mxu0 0.0
    %686 = vmatpush1.msra.mxu0 0.0
    %687 = vmatprep.subr.mxu0 0.0
    %688 = vmatpush1.msra.mxu0 0.0
    %689 = vmatprep.subr.mxu0 0.0
    %690 = vmatpush1.msra.mxu0 0.0
    %691 = vmatprep.subr.mxu0 0.0
    %692 = vmatpush1.msra.mxu0 0.0
    %693 = vmatprep.subr.mxu0 0.0
    %694 = vmatpush1.msra.mxu0 0.0
    %695 = vmatprep.subr.mxu0 0.0
    %696 = vmatpush1.msra.mxu0 0.0
    %697 = vmatprep.subr.mxu0 0.0
    %698 = vmatpush1.msra.mxu0 0.0
    %699 = vmatprep.subr.mxu0 0.0
    %700 = vmatpush1.msra.mxu0 0.0
    %701 = vmatprep.subr.mxu0 0.0
    %702 = vmatpush1.msra.mxu0 0.0
    %703 = vmatprep.mubr.f32.mxu0 0.0
    %704 = vmatmul.mubr.f32.gmra.mrb[0].mxu0 0.0
    %v705 = vpop.f32.mrb[0].mxu0
    %v706 = vadd.f32 0.0, %v705
    %v707 = vpop.f32.mrb[0].mxu0
    %v708 = vadd.f32 0.0, %v707
    %709 = vmatprep.mubr.f32.mxu0 0.0
    %710 = vmatmul.mubr.f32.gmra.mrb[0].mxu0 0.0
    %v711 = vpop.f32.mrb[0].mxu0
    %v712 = vadd.f32 0.0, %v711
    %v713 = vpop.f32.mrb[0].mxu0
    %v714 = vadd.f32 0.0, %v713
    %715 = vdwg.mxu0
    %716 = vmatprep.subr.mxu0 %v578
    %717 = vmatpush1.msra.mxu0 %v577
    %718 = vmatprep.subr.mxu0 %v582
    %719 = vmatpush1.msra.mxu0 %v581
    %720 = vmatprep.subr.mxu0 %v586
    %721 = vmatpush1.msra.mxu0 %v585
    %722 = vmatprep.subr.mxu0 %v590
    %723 = vmatpush1.msra.mxu0 %v589
    %724 = vmatprep.subr.mxu0 %v594
    %725 = vmatpush1.msra.mxu0 %v593
    %726 = vmatprep.subr.mxu0 %v598
    %727 = vmatpush1.msra.mxu0 %v597
    %728 = vmatprep.subr.mxu0 %v602
    %729 = vmatpush1.msra.mxu0 %v601
    %730 = vmatprep.subr.mxu0 %v606
    %731 = vmatpush1.msra.mxu0 %v605
    %732 = vmatprep.subr.mxu0 %v610
    %733 = vmatpush1.msra.mxu0 %v609
    %734 = vmatprep.subr.mxu0 %v614
    %735 = vmatpush1.msra.mxu0 %v613
    %736 = vmatprep.subr.mxu0 %v618
    %737 = vmatpush1.msra.mxu0 %v617
    %738 = vmatprep.subr.mxu0 %v622
    %739 = vmatpush1.msra.mxu0 %v621
    %740 = vmatprep.subr.mxu0 %v626
    %741 = vmatpush1.msra.mxu0 %v625
    %742 = vmatprep.subr.mxu0 %v630
    %743 = vmatpush1.msra.mxu0 %v629
    %744 = vmatprep.subr.mxu0 %v634
    %745 = vmatpush1.msra.mxu0 %v633
    %746 = vmatprep.subr.mxu0 %v638
    %747 = vmatpush1.msra.mxu0 %v637
    %748 = vmatprep.subr.mxu0 0.0
    %749 = vmatpush1.msra.mxu0 0.0
    %750 = vmatprep.subr.mxu0 0.0
    %751 = vmatpush1.msra.mxu0 0.0
    %752 = vmatprep.subr.mxu0 0.0
    %753 = vmatpush1.msra.mxu0 0.0
    %754 = vmatprep.subr.mxu0 0.0
    %755 = vmatpush1.msra.mxu0 0.0
    %756 = vmatprep.subr.mxu0 0.0
    %757 = vmatpush1.msra.mxu0 0.0
    %758 = vmatprep.subr.mxu0 0.0
    %759 = vmatpush1.msra.mxu0 0.0
    %760 = vmatprep.subr.mxu0 0.0
    %761 = vmatpush1.msra.mxu0 0.0
    %762 = vmatprep.subr.mxu0 0.0
    %763 = vmatpush1.msra.mxu0 0.0
    %764 = vmatprep.subr.mxu0 0.0
    %765 = vmatpush1.msra.mxu0 0.0
    %766 = vmatprep.subr.mxu0 0.0
    %767 = vmatpush1.msra.mxu0 0.0
    %768 = vmatprep.subr.mxu0 0.0
    %769 = vmatpush1.msra.mxu0 0.0
    %770 = vmatprep.subr.mxu0 0.0
    %771 = vmatpush1.msra.mxu0 0.0
    %772 = vmatprep.subr.mxu0 0.0
    %773 = vmatpush1.msra.mxu0 0.0
    %774 = vmatprep.subr.mxu0 0.0
    %775 = vmatpush1.msra.mxu0 0.0
    %776 = vmatprep.subr.mxu0 0.0
    %777 = vmatpush1.msra.mxu0 0.0
    %778 = vmatprep.subr.mxu0 0.0
    %779 = vmatpush1.msra.mxu0 0.0
    %780 = vmatprep.mubr.f32.mxu0 0.0
    %781 = vmatmul.mubr.f32.gmra.mrb[0].mxu0 0.0
    %v782 = vpop.f32.mrb[0].mxu0
    %v783 = vadd.f32 0.0, %v782
    %v784 = vpop.f32.mrb[0].mxu0
    %v785 = vadd.f32 0.0, %v784
    %786 = vmatprep.mubr.f32.mxu0 0.0
    %787 = vmatmul.mubr.f32.gmra.mrb[0].mxu0 0.0
    %v788 = vpop.f32.mrb[0].mxu0
    %v789 = vadd.f32 0.0, %v788
    %v790 = vpop.f32.mrb[0].mxu0
    %v791 = vadd.f32 0.0, %v790
    %792 = vdwg.mxu0
    %v793 = vadd.f32 %v567, %v706
    %v794 = vadd.f32 %v568, %v708
    %v795 = vadd.f32 %v569, %v783
    %v796 = vadd.f32 %v570, %v785
    %v797 = vadd.f32 %v571, %v712
    %v798 = vadd.f32 %v572, %v714
    %v799 = vadd.f32 %v573, %v789
    %v800 = vadd.f32 %v574, %v791
    %v801 = vxor.u32 %v793, 2147483648
    %v802 = vxor.u32 %v794, 2147483648
    %v803 = vxor.u32 %v795, 2147483648
    %v804 = vxor.u32 %v797, 2147483648
    %v805 = vxor.u32 %v798, 2147483648
    %v806 = vxor.u32 %v799, 2147483648
    %v807 = vmul.f32 %v801, 1.442695
    %v808 = vpow.pop %v807
    %v809 = vmul.f32 %v802, 1.442695
    %v810 = vpow.pop %v809
    %v811 = vmul.f32 %v803, 1.442695
    %v812 = vpow.pop %v811
    %v813 = vmul.f32 %v804, 1.442695
    %v814 = vpow.pop %v813
    %v815 = vmul.f32 %v805, 1.442695
    %v816 = vpow.pop %v815
    %v817 = vmul.f32 %v806, 1.442695
    %v818 = vpow.pop %v817
    %v819 = vadd.f32 %v808, 1.0
    %v820 = vadd.f32 %v810, 1.0
    %v821 = vadd.f32 %v812, 1.0
    %v822 = vadd.f32 %v814, 1.0
    %v823 = vadd.f32 %v816, 1.0
    %v824 = vadd.f32 %v818, 1.0
    %v825 = vrcp.pop %v819
    %v826 = vmul.f32 1.0, %v825
    %v827 = vrcp.pop %v820
    %v828 = vmul.f32 1.0, %v827
    %v829 = vrcp.pop %v821
    %v830 = vmul.f32 1.0, %v829
    %v831 = vrcp.pop %v822
    %v832 = vmul.f32 1.0, %v831
    %v833 = vrcp.pop %v823
    %v834 = vmul.f32 1.0, %v833
    %v835 = vrcp.pop %v824
    %v836 = vmul.f32 1.0, %v835
    %v837 = vtanh.pop %v796
    %v838 = vtanh.pop %v800
    %v839 = vmul.f32 %v828, 0.0
    %v840 = vmul.f32 %v834, 0.0
    %v841 = vmul.f32 %v826, %v837
    %v842 = vmul.f32 %v832, %v838
    %v843 = vadd.f32 %v839, %v841
    %v844 = vadd.f32 %v840, %v842
    %v845 = vtanh.pop %v843
    %v846 = vtanh.pop %v844
    %v847 = vmul.f32 %v830, %v845
    %v848 = vmul.f32 %v836, %v846
    %s849 = scalar_lea.vmem [#allocation2], 64
    %v850 = vld [vmem:[%s849] sm:$0xff]
    %v851 = vld [vmem:[%s849 + $0x8] sm:$0xff]
    %v852 = vld [vmem:[%s849 + $0x10] sm:$0xff]
    %v853 = vld [vmem:[%s849 + $0x18] sm:$0xff]
    %v854 = vld [vmem:[%s849 + $0x20] sm:$0xff]
    %v855 = vld [vmem:[%s849 + $0x28] sm:$0xff]
    %v856 = vld [vmem:[%s849 + $0x30] sm:$0xff]
    %v857 = vld [vmem:[%s849 + $0x38] sm:$0xff]
    %858 = vmatprep.subr.mxu0 %v576
    %859 = vmatpush1.msra.mxu0 %v575
    %860 = vmatprep.subr.mxu0 %v580
    %861 = vmatpush1.msra.mxu0 %v579
    %862 = vmatprep.subr.mxu0 %v584
    %863 = vmatpush1.msra.mxu0 %v583
    %864 = vmatprep.subr.mxu0 %v588
    %865 = vmatpush1.msra.mxu0 %v587
    %866 = vmatprep.subr.mxu0 %v592
    %867 = vmatpush1.msra.mxu0 %v591
    %868 = vmatprep.subr.mxu0 %v596
    %869 = vmatpush1.msra.mxu0 %v595
    %870 = vmatprep.subr.mxu0 %v600
    %871 = vmatpush1.msra.mxu0 %v599
    %872 = vmatprep.subr.mxu0 %v604
    %873 = vmatpush1.msra.mxu0 %v603
    %874 = vmatprep.subr.mxu0 %v608
    %875 = vmatpush1.msra.mxu0 %v607
    %876 = vmatprep.subr.mxu0 %v612
    %877 = vmatpush1.msra.mxu0 %v611
    %878 = vmatprep.subr.mxu0 %v616
    %879 = vmatpush1.msra.mxu0 %v615
    %880 = vmatprep.subr.mxu0 %v620
    %881 = vmatpush1.msra.mxu0 %v619
    %882 = vmatprep.subr.mxu0 %v624
    %883 = vmatpush1.msra.mxu0 %v623
    %884 = vmatprep.subr.mxu0 %v628
    %885 = vmatpush1.msra.mxu0 %v627
    %886 = vmatprep.subr.mxu0 %v632
    %887 = vmatpush1.msra.mxu0 %v631
    %888 = vmatprep.subr.mxu0 %v636
    %889 = vmatpush1.msra.mxu0 %v635
    %890 = vmatprep.subr.mxu0 0.0
    %891 = vmatpush1.msra.mxu0 0.0
    %892 = vmatprep.subr.mxu0 0.0
    %893 = vmatpush1.msra.mxu0 0.0
    %894 = vmatprep.subr.mxu0 0.0
    %895 = vmatpush1.msra.mxu0 0.0
    %896 = vmatprep.subr.mxu0 0.0
    %897 = vmatpush1.msra.mxu0 0.0
    %898 = vmatprep.subr.mxu0 0.0
    %899 = vmatpush1.msra.mxu0 0.0
    %900 = vmatprep.subr.mxu0 0.0
    %901 = vmatpush1.msra.mxu0 0.0
    %902 = vmatprep.subr.mxu0 0.0
    %903 = vmatpush1.msra.mxu0 0.0
    %904 = vmatprep.subr.mxu0 0.0
    %905 = vmatpush1.msra.mxu0 0.0
    %906 = vmatprep.subr.mxu0 0.0
    %907 = vmatpush1.msra.mxu0 0.0
    %908 = vmatprep.subr.mxu0 0.0
    %909 = vmatpush1.msra.mxu0 0.0
    %910 = vmatprep.subr.mxu0 0.0
    %911 = vmatpush1.msra.mxu0 0.0
    %912 = vmatprep.subr.mxu0 0.0
    %913 = vmatpush1.msra.mxu0 0.0
    %914 = vmatprep.subr.mxu0 0.0
    %915 = vmatpush1.msra.mxu0 0.0
    %916 = vmatprep.subr.mxu0 0.0
    %917 = vmatpush1.msra.mxu0 0.0
    %918 = vmatprep.subr.mxu0 0.0
    %919 = vmatpush1.msra.mxu0 0.0
    %920 = vmatprep.subr.mxu0 0.0
    %921 = vmatpush1.msra.mxu0 0.0
    %922 = vmatprep.mubr.f32.mxu0 0.0
    %923 = vmatmul.mubr.f32.gmra.mrb[0].mxu0 %v847
    %v924 = vpop.f32.mrb[0].mxu0
    %v925 = vadd.f32 0.0, %v924
    %v926 = vpop.f32.mrb[0].mxu0
    %v927 = vadd.f32 0.0, %v926
    %928 = vmatprep.mubr.f32.mxu0 0.0
    %929 = vmatmul.mubr.f32.gmra.mrb[0].mxu0 %v848
    %v930 = vpop.f32.mrb[0].mxu0
    %v931 = vadd.f32 0.0, %v930
    %v932 = vpop.f32.mrb[0].mxu0
    %v933 = vadd.f32 0.0, %v932
    %934 = vdwg.mxu0
    %935 = vmatprep.subr.mxu0 %v578
    %936 = vmatpush1.msra.mxu0 %v577
    %937 = vmatprep.subr.mxu0 %v582
    %938 = vmatpush1.msra.mxu0 %v581
    %939 = vmatprep.subr.mxu0 %v586
    %940 = vmatpush1.msra.mxu0 %v585
    %941 = vmatprep.subr.mxu0 %v590
    %942 = vmatpush1.msra.mxu0 %v589
    %943 = vmatprep.subr.mxu0 %v594
    %944 = vmatpush1.msra.mxu0 %v593
    %945 = vmatprep.subr.mxu0 %v598
    %946 = vmatpush1.msra.mxu0 %v597
    %947 = vmatprep.subr.mxu0 %v602
    %948 = vmatpush1.msra.mxu0 %v601
    %949 = vmatprep.subr.mxu0 %v606
    %950 = vmatpush1.msra.mxu0 %v605
    %951 = vmatprep.subr.mxu0 %v610
    %952 = vmatpush1.msra.mxu0 %v609
    %953 = vmatprep.subr.mxu0 %v614
    %954 = vmatpush1.msra.mxu0 %v613
    %955 = vmatprep.subr.mxu0 %v618
    %956 = vmatpush1.msra.mxu0 %v617
    %957 = vmatprep.subr.mxu0 %v622
    %958 = vmatpush1.msra.mxu0 %v621
    %959 = vmatprep.subr.mxu0 %v626
    %960 = vmatpush1.msra.mxu0 %v625
    %961 = vmatprep.subr.mxu0 %v630
    %962 = vmatpush1.msra.mxu0 %v629
    %963 = vmatprep.subr.mxu0 %v634
    %964 = vmatpush1.msra.mxu0 %v633
    %965 = vmatprep.subr.mxu0 %v638
    %966 = vmatpush1.msra.mxu0 %v637
    %967 = vmatprep.subr.mxu0 0.0
    %968 = vmatpush1.msra.mxu0 0.0
    %969 = vmatprep.subr.mxu0 0.0
    %970 = vmatpush1.msra.mxu0 0.0
    %971 = vmatprep.subr.mxu0 0.0
    %972 = vmatpush1.msra.mxu0 0.0
    %973 = vmatprep.subr.mxu0 0.0
    %974 = vmatpush1.msra.mxu0 0.0
    %975 = vmatprep.subr.mxu0 0.0
    %976 = vmatpush1.msra.mxu0 0.0
    %977 = vmatprep.subr.mxu0 0.0
    %978 = vmatpush1.msra.mxu0 0.0
    %979 = vmatprep.subr.mxu0 0.0
    %980 = vmatpush1.msra.mxu0 0.0
    %981 = vmatprep.subr.mxu0 0.0
    %982 = vmatpush1.msra.mxu0 0.0
    %983 = vmatprep.subr.mxu0 0.0
    %984 = vmatpush1.msra.mxu0 0.0
    %985 = vmatprep.subr.mxu0 0.0
    %986 = vmatpush1.msra.mxu0 0.0
    %987 = vmatprep.subr.mxu0 0.0
    %988 = vmatpush1.msra.mxu0 0.0
    %989 = vmatprep.subr.mxu0 0.0
    %990 = vmatpush1.msra.mxu0 0.0
    %991 = vmatprep.subr.mxu0 0.0
    %992 = vmatpush1.msra.mxu0 0.0
    %993 = vmatprep.subr.mxu0 0.0
    %994 = vmatpush1.msra.mxu0 0.0
    %995 = vmatprep.subr.mxu0 0.0
    %996 = vmatpush1.msra.mxu0 0.0
    %997 = vmatprep.subr.mxu0 0.0
    %998 = vmatpush1.msra.mxu0 0.0
    %999 = vmatprep.mubr.f32.mxu0 0.0
    %1000 = vmatmul.mubr.f32.gmra.mrb[0].mxu0 %v847
    %v1001 = vpop.f32.mrb[0].mxu0
    %v1002 = vadd.f32 0.0, %v1001
    %v1003 = vpop.f32.mrb[0].mxu0
    %v1004 = vadd.f32 0.0, %v1003
    %1005 = vmatprep.mubr.f32.mxu0 0.0
    %1006 = vmatmul.mubr.f32.gmra.mrb[0].mxu0 %v848
    %v1007 = vpop.f32.mrb[0].mxu0
    %v1008 = vadd.f32 0.0, %v1007
    %v1009 = vpop.f32.mrb[0].mxu0
    %v1010 = vadd.f32 0.0, %v1009
    %1011 = vdwg.mxu0
    %v1012 = vadd.f32 %v850, %v925
    %v1013 = vadd.f32 %v851, %v927
    %v1014 = vadd.f32 %v852, %v1002
    %v1015 = vadd.f32 %v853, %v1004
    %v1016 = vadd.f32 %v854, %v931
    %v1017 = vadd.f32 %v855, %v933
    %v1018 = vadd.f32 %v856, %v1008
    %v1019 = vadd.f32 %v857, %v1010
    %v1020 = vxor.u32 %v1012, 2147483648
    %v1021 = vxor.u32 %v1013, 2147483648
    %v1022 = vxor.u32 %v1014, 2147483648
    %v1023 = vxor.u32 %v1016, 2147483648
    %v1024 = vxor.u32 %v1017, 2147483648
    %v1025 = vxor.u32 %v1018, 2147483648
    %v1026 = vmul.f32 %v1020, 1.442695
    %v1027 = vpow.pop %v1026
    %v1028 = vmul.f32 %v1021, 1.442695
    %v1029 = vpow.pop %v1028
    %v1030 = vmul.f32 %v1022, 1.442695
    %v1031 = vpow.pop %v1030
    %v1032 = vmul.f32 %v1023, 1.442695
    %v1033 = vpow.pop %v1032
    %v1034 = vmul.f32 %v1024, 1.442695
    %v1035 = vpow.pop %v1034
    %v1036 = vmul.f32 %v1025, 1.442695
    %v1037 = vpow.pop %v1036
    %v1038 = vadd.f32 %v1027, 1.0
    %v1039 = vadd.f32 %v1029, 1.0
    %v1040 = vadd.f32 %v1031, 1.0
    %v1041 = vadd.f32 %v1033, 1.0
    %v1042 = vadd.f32 %v1035, 1.0
    %v1043 = vadd.f32 %v1037, 1.0
    %v1044 = vrcp.pop %v1038
    %v1045 = vmul.f32 1.0, %v1044
    %v1046 = vrcp.pop %v1039
    %v1047 = vmul.f32 1.0, %v1046
    %v1048 = vrcp.pop %v1040
    %v1049 = vmul.f32 1.0, %v1048
    %v1050 = vrcp.pop %v1041
    %v1051 = vmul.f32 1.0, %v1050
    %v1052 = vrcp.pop %v1042
    %v1053 = vmul.f32 1.0, %v1052
    %v1054 = vrcp.pop %v1043
    %v1055 = vmul.f32 1.0, %v1054
    %v1056 = vtanh.pop %v1015
    %v1057 = vtanh.pop %v1019
    %v1058 = vmul.f32 %v1047, %v843
    %v1059 = vmul.f32 %v1053, %v844
    %v1060 = vmul.f32 %v1045, %v1056
    %v1061 = vmul.f32 %v1051, %v1057
    %v1062 = vadd.f32 %v1058, %v1060
    %v1063 = vadd.f32 %v1059, %v1061
    %v1064 = vtanh.pop %v1062
    %v1065 = vtanh.pop %v1063
    %v1066 = vmul.f32 %v1049, %v1064
    %v1067 = vmul.f32 %v1055, %v1065
    %s1068 = scalar_lea.vmem [#allocation2], 128
    %v1069 = vld [vmem:[%s1068] sm:$0xff]
    %v1070 = vld [vmem:[%s1068 + $0x8] sm:$0xff]
    %v1071 = vld [vmem:[%s1068 + $0x10] sm:$0xff]
    %v1072 = vld [vmem:[%s1068 + $0x18] sm:$0xff]
    %v1073 = vld [vmem:[%s1068 + $0x20] sm:$0xff]
    %v1074 = vld [vmem:[%s1068 + $0x28] sm:$0xff]
    %v1075 = vld [vmem:[%s1068 + $0x30] sm:$0xff]
    %v1076 = vld [vmem:[%s1068 + $0x38] sm:$0xff]
    %1077 = vmatprep.subr.mxu0 %v576
    %1078 = vmatpush1.msra.mxu0 %v575
    %1079 = vmatprep.subr.mxu0 %v580
    %1080 = vmatpush1.msra.mxu0 %v579
    %1081 = vmatprep.subr.mxu0 %v584
    %1082 = vmatpush1.msra.mxu0 %v583
    %1083 = vmatprep.subr.mxu0 %v588
    %1084 = vmatpush1.msra.mxu0 %v587
    %1085 = vmatprep.subr.mxu0 %v592
    %1086 = vmatpush1.msra.mxu0 %v591
    %1087 = vmatprep.subr.mxu0 %v596
    %1088 = vmatpush1.msra.mxu0 %v595
    %1089 = vmatprep.subr.mxu0 %v600
    %1090 = vmatpush1.msra.mxu0 %v599
    %1091 = vmatprep.subr.mxu0 %v604
    %1092 = vmatpush1.msra.mxu0 %v603
    %1093 = vmatprep.subr.mxu0 %v608
    %1094 = vmatpush1.msra.mxu0 %v607
    %1095 = vmatprep.subr.mxu0 %v612
    %1096 = vmatpush1.msra.mxu0 %v611
    %1097 = vmatprep.subr.mxu0 %v616
    %1098 = vmatpush1.msra.mxu0 %v615
    %1099 = vmatprep.subr.mxu0 %v620
    %1100 = vmatpush1.msra.mxu0 %v619
    %1101 = vmatprep.subr.mxu0 %v624
    %1102 = vmatpush1.msra.mxu0 %v623
    %1103 = vmatprep.subr.mxu0 %v628
    %1104 = vmatpush1.msra.mxu0 %v627
    %1105 = vmatprep.subr.mxu0 %v632
    %1106 = vmatpush1.msra.mxu0 %v631
    %1107 = vmatprep.subr.mxu0 %v636
    %1108 = vmatpush1.msra.mxu0 %v635
    %1109 = vmatprep.subr.mxu0 0.0
    %1110 = vmatpush1.msra.mxu0 0.0
    %1111 = vmatprep.subr.mxu0 0.0
    %1112 = vmatpush1.msra.mxu0 0.0
    %1113 = vmatprep.subr.mxu0 0.0
    %1114 = vmatpush1.msra.mxu0 0.0
    %1115 = vmatprep.subr.mxu0 0.0
    %1116 = vmatpush1.msra.mxu0 0.0
    %1117 = vmatprep.subr.mxu0 0.0
    %1118 = vmatpush1.msra.mxu0 0.0
    %1119 = vmatprep.subr.mxu0 0.0
    %1120 = vmatpush1.msra.mxu0 0.0
    %1121 = vmatprep.subr.mxu0 0.0
    %1122 = vmatpush1.msra.mxu0 0.0
    %1123 = vmatprep.subr.mxu0 0.0
    %1124 = vmatpush1.msra.mxu0 0.0
    %1125 = vmatprep.subr.mxu0 0.0
    %1126 = vmatpush1.msra.mxu0 0.0
    %1127 = vmatprep.subr.mxu0 0.0
    %1128 = vmatpush1.msra.mxu0 0.0
    %1129 = vmatprep.subr.mxu0 0.0
    %1130 = vmatpush1.msra.mxu0 0.0
    %1131 = vmatprep.subr.mxu0 0.0
    %1132 = vmatpush1.msra.mxu0 0.0
    %1133 = vmatprep.subr.mxu0 0.0
    %1134 = vmatpush1.msra.mxu0 0.0
    %1135 = vmatprep.subr.mxu0 0.0
    %1136 = vmatpush1.msra.mxu0 0.0
    %1137 = vmatprep.subr.mxu0 0.0
    %1138 = vmatpush1.msra.mxu0 0.0
    %1139 = vmatprep.subr.mxu0 0.0
    %1140 = vmatpush1.msra.mxu0 0.0
    %1141 = vmatprep.mubr.f32.mxu0 0.0
    %1142 = vmatmul.mubr.f32.gmra.mrb[0].mxu0 %v1066
    %v1143 = vpop.f32.mrb[0].mxu0
    %v1144 = vadd.f32 0.0, %v1143
    %v1145 = vpop.f32.mrb[0].mxu0
    %v1146 = vadd.f32 0.0, %v1145
    %1147 = vmatprep.mubr.f32.mxu0 0.0
    %1148 = vmatmul.mubr.f32.gmra.mrb[0].mxu0 %v1067
    %v1149 = vpop.f32.mrb[0].mxu0
    %v1150 = vadd.f32 0.0, %v1149
    %v1151 = vpop.f32.mrb[0].mxu0
    %v1152 = vadd.f32 0.0, %v1151
    %1153 = vdwg.mxu0
    %1154 = vmatprep.subr.mxu0 %v578
    %1155 = vmatpush1.msra.mxu0 %v577
    %1156 = vmatprep.subr.mxu0 %v582
    %1157 = vmatpush1.msra.mxu0 %v581
    %1158 = vmatprep.subr.mxu0 %v586
    %1159 = vmatpush1.msra.mxu0 %v585
    %1160 = vmatprep.subr.mxu0 %v590
    %1161 = vmatpush1.msra.mxu0 %v589
    %1162 = vmatprep.subr.mxu0 %v594
    %1163 = vmatpush1.msra.mxu0 %v593
    %1164 = vmatprep.subr.mxu0 %v598
    %1165 = vmatpush1.msra.mxu0 %v597
    %1166 = vmatprep.subr.mxu0 %v602
    %1167 = vmatpush1.msra.mxu0 %v601
    %1168 = vmatprep.subr.mxu0 %v606
    %1169 = vmatpush1.msra.mxu0 %v605
    %1170 = vmatprep.subr.mxu0 %v610
    %1171 = vmatpush1.msra.mxu0 %v609
    %1172 = vmatprep.subr.mxu0 %v614
    %1173 = vmatpush1.msra.mxu0 %v613
    %1174 = vmatprep.subr.mxu0 %v618
    %1175 = vmatpush1.msra.mxu0 %v617
    %1176 = vmatprep.subr.mxu0 %v622
    %1177 = vmatpush1.msra.mxu0 %v621
    %1178 = vmatprep.subr.mxu0 %v626
    %1179 = vmatpush1.msra.mxu0 %v625
    %1180 = vmatprep.subr.mxu0 %v630
    %1181 = vmatpush1.msra.mxu0 %v629
    %1182 = vmatprep.subr.mxu0 %v634
    %1183 = vmatpush1.msra.mxu0 %v633
    %1184 = vmatprep.subr.mxu0 %v638
    %1185 = vmatpush1.msra.mxu0 %v637
    %1186 = vmatprep.subr.mxu0 0.0
    %1187 = vmatpush1.msra.mxu0 0.0
    %1188 = vmatprep.subr.mxu0 0.0
    %1189 = vmatpush1.msra.mxu0 0.0
    %1190 = vmatprep.subr.mxu0 0.0
    %1191 = vmatpush1.msra.mxu0 0.0
    %1192 = vmatprep.subr.mxu0 0.0
    %1193 = vmatpush1.msra.mxu0 0.0
    %1194 = vmatprep.subr.mxu0 0.0
    %1195 = vmatpush1.msra.mxu0 0.0
    %1196 = vmatprep.subr.mxu0 0.0
    %1197 = vmatpush1.msra.mxu0 0.0
    %1198 = vmatprep.subr.mxu0 0.0
    %1199 = vmatpush1.msra.mxu0 0.0
    %1200 = vmatprep.subr.mxu0 0.0
    %1201 = vmatpush1.msra.mxu0 0.0
    %1202 = vmatprep.subr.mxu0 0.0
    %1203 = vmatpush1.msra.mxu0 0.0
    %1204 = vmatprep.subr.mxu0 0.0
    %1205 = vmatpush1.msra.mxu0 0.0
    %1206 = vmatprep.subr.mxu0 0.0
    %1207 = vmatpush1.msra.mxu0 0.0
    %1208 = vmatprep.subr.mxu0 0.0
    %1209 = vmatpush1.msra.mxu0 0.0
    %1210 = vmatprep.subr.mxu0 0.0
    %1211 = vmatpush1.msra.mxu0 0.0
    %1212 = vmatprep.subr.mxu0 0.0
    %1213 = vmatpush1.msra.mxu0 0.0
    %1214 = vmatprep.subr.mxu0 0.0
    %1215 = vmatpush1.msra.mxu0 0.0
    %1216 = vmatprep.subr.mxu0 0.0
    %1217 = vmatpush1.msra.mxu0 0.0
    %1218 = vmatprep.mubr.f32.mxu0 0.0
    %1219 = vmatmul.mubr.f32.gmra.mrb[0].mxu0 %v1066
    %v1220 = vpop.f32.mrb[0].mxu0
    %v1221 = vadd.f32 0.0, %v1220
    %v1222 = vpop.f32.mrb[0].mxu0
    %v1223 = vadd.f32 0.0, %v1222
    %1224 = vmatprep.mubr.f32.mxu0 0.0
    %1225 = vmatmul.mubr.f32.gmra.mrb[0].mxu0 %v1067
    %v1226 = vpop.f32.mrb[0].mxu0
    %v1227 = vadd.f32 0.0, %v1226
    %v1228 = vpop.f32.mrb[0].mxu0
    %v1229 = vadd.f32 0.0, %v1228
    %1230 = vdwg.mxu0
    %v1231 = vadd.f32 %v1069, %v1144
    %v1232 = vadd.f32 %v1070, %v1146
    %v1233 = vadd.f32 %v1071, %v1221
    %v1234 = vadd.f32 %v1072, %v1223
    %v1235 = vadd.f32 %v1073, %v1150
    %v1236 = vadd.f32 %v1074, %v1152
    %v1237 = vadd.f32 %v1075, %v1227
    %v1238 = vadd.f32 %v1076, %v1229
    %v1239 = vxor.u32 %v1231, 2147483648
    %v1240 = vxor.u32 %v1232, 2147483648
    %v1241 = vxor.u32 %v1233, 2147483648
    %v1242 = vxor.u32 %v1235, 2147483648
    %v1243 = vxor.u32 %v1236, 2147483648
    %v1244 = vxor.u32 %v1237, 2147483648
    %v1245 = vmul.f32 %v1239, 1.442695
    %v1246 = vpow.pop %v1245
    %v1247 = vmul.f32 %v1240, 1.442695
    %v1248 = vpow.pop %v1247
    %v1249 = vmul.f32 %v1241, 1.442695
    %v1250 = vpow.pop %v1249
    %v1251 = vmul.f32 %v1242, 1.442695
    %v1252 = vpow.pop %v1251
    %v1253 = vmul.f32 %v1243, 1.442695
    %v1254 = vpow.pop %v1253
    %v1255 = vmul.f32 %v1244, 1.442695
    %v1256 = vpow.pop %v1255
    %v1257 = vadd.f32 %v1246, 1.0
    %v1258 = vadd.f32 %v1248, 1.0
    %v1259 = vadd.f32 %v1250, 1.0
    %v1260 = vadd.f32 %v1252, 1.0
    %v1261 = vadd.f32 %v1254, 1.0
    %v1262 = vadd.f32 %v1256, 1.0
    %v1263 = vrcp.pop %v1257
    %v1264 = vmul.f32 1.0, %v1263
    %v1265 = vrcp.pop %v1258
    %v1266 = vmul.f32 1.0, %v1265
    %v1267 = vrcp.pop %v1259
    %v1268 = vmul.f32 1.0, %v1267
    %v1269 = vrcp.pop %v1260
    %v1270 = vmul.f32 1.0, %v1269
    %v1271 = vrcp.pop %v1261
    %v1272 = vmul.f32 1.0, %v1271
    %v1273 = vrcp.pop %v1262
    %v1274 = vmul.f32 1.0, %v1273
    %v1275 = vtanh.pop %v1234
    %v1276 = vtanh.pop %v1238
    %v1277 = vmul.f32 %v1266, %v1062
    %v1278 = vmul.f32 %v1272, %v1063
    %v1279 = vmul.f32 %v1264, %v1275
    %v1280 = vmul.f32 %v1270, %v1276
    %v1281 = vadd.f32 %v1277, %v1279
    %v1282 = vadd.f32 %v1278, %v1280
    %v1283 = vtanh.pop %v1281
    %v1284 = vtanh.pop %v1282
    %v1285 = vmul.f32 %v1268, %v1283
    %v1286 = vmul.f32 %v1274, %v1284
    %s1287 = scalar_lea.vmem [#allocation2], 192
    %v1288 = vld [vmem:[%s1287] sm:$0xff]
    %v1289 = vld [vmem:[%s1287 + $0x8] sm:$0xff]
    %v1290 = vld [vmem:[%s1287 + $0x10] sm:$0xff]
    %v1291 = vld [vmem:[%s1287 + $0x18] sm:$0xff]
    %v1292 = vld [vmem:[%s1287 + $0x20] sm:$0xff]
    %v1293 = vld [vmem:[%s1287 + $0x28] sm:$0xff]
    %v1294 = vld [vmem:[%s1287 + $0x30] sm:$0xff]
    %v1295 = vld [vmem:[%s1287 + $0x38] sm:$0xff]
    %1296 = vmatprep.subr.mxu0 %v576
    %1297 = vmatpush1.msra.mxu0 %v575
    %1298 = vmatprep.subr.mxu0 %v580
    %1299 = vmatpush1.msra.mxu0 %v579
    %1300 = vmatprep.subr.mxu0 %v584
    %1301 = vmatpush1.msra.mxu0 %v583
    %1302 = vmatprep.subr.mxu0 %v588
    %1303 = vmatpush1.msra.mxu0 %v587
    %1304 = vmatprep.subr.mxu0 %v592
    %1305 = vmatpush1.msra.mxu0 %v591
    %1306 = vmatprep.subr.mxu0 %v596
    %1307 = vmatpush1.msra.mxu0 %v595
    %1308 = vmatprep.subr.mxu0 %v600
    %1309 = vmatpush1.msra.mxu0 %v599
    %1310 = vmatprep.subr.mxu0 %v604
    %1311 = vmatpush1.msra.mxu0 %v603
    %1312 = vmatprep.subr.mxu0 %v608
    %1313 = vmatpush1.msra.mxu0 %v607
    %1314 = vmatprep.subr.mxu0 %v612
    %1315 = vmatpush1.msra.mxu0 %v611
    %1316 = vmatprep.subr.mxu0 %v616
    %1317 = vmatpush1.msra.mxu0 %v615
    %1318 = vmatprep.subr.mxu0 %v620
    %1319 = vmatpush1.msra.mxu0 %v619
    %1320 = vmatprep.subr.mxu0 %v624
    %1321 = vmatpush1.msra.mxu0 %v623
    %1322 = vmatprep.subr.mxu0 %v628
    %1323 = vmatpush1.msra.mxu0 %v627
    %1324 = vmatprep.subr.mxu0 %v632
    %1325 = vmatpush1.msra.mxu0 %v631
    %1326 = vmatprep.subr.mxu0 %v636
    %1327 = vmatpush1.msra.mxu0 %v635
    %1328 = vmatprep.subr.mxu0 0.0
    %1329 = vmatpush1.msra.mxu0 0.0
    %1330 = vmatprep.subr.mxu0 0.0
    %1331 = vmatpush1.msra.mxu0 0.0
    %1332 = vmatprep.subr.mxu0 0.0
    %1333 = vmatpush1.msra.mxu0 0.0
    %1334 = vmatprep.subr.mxu0 0.0
    %1335 = vmatpush1.msra.mxu0 0.0
    %1336 = vmatprep.subr.mxu0 0.0
    %1337 = vmatpush1.msra.mxu0 0.0
    %1338 = vmatprep.subr.mxu0 0.0
    %1339 = vmatpush1.msra.mxu0 0.0
    %1340 = vmatprep.subr.mxu0 0.0
    %1341 = vmatpush1.msra.mxu0 0.0
    %1342 = vmatprep.subr.mxu0 0.0
    %1343 = vmatpush1.msra.mxu0 0.0
    %1344 = vmatprep.subr.mxu0 0.0
    %1345 = vmatpush1.msra.mxu0 0.0
    %1346 = vmatprep.subr.mxu0 0.0
    %1347 = vmatpush1.msra.mxu0 0.0
    %1348 = vmatprep.subr.mxu0 0.0
    %1349 = vmatpush1.msra.mxu0 0.0
    %1350 = vmatprep.subr.mxu0 0.0
    %1351 = vmatpush1.msra.mxu0 0.0
    %1352 = vmatprep.subr.mxu0 0.0
    %1353 = vmatpush1.msra.mxu0 0.0
    %1354 = vmatprep.subr.mxu0 0.0
    %1355 = vmatpush1.msra.mxu0 0.0
    %1356 = vmatprep.subr.mxu0 0.0
    %1357 = vmatpush1.msra.mxu0 0.0
    %1358 = vmatprep.subr.mxu0 0.0
    %1359 = vmatpush1.msra.mxu0 0.0
    %1360 = vmatprep.mubr.f32.mxu0 0.0
    %1361 = vmatmul.mubr.f32.gmra.mrb[0].mxu0 %v1285
    %v1362 = vpop.f32.mrb[0].mxu0
    %v1363 = vadd.f32 0.0, %v1362
    %v1364 = vpop.f32.mrb[0].mxu0
    %v1365 = vadd.f32 0.0, %v1364
    %1366 = vmatprep.mubr.f32.mxu0 0.0
    %1367 = vmatmul.mubr.f32.gmra.mrb[0].mxu0 %v1286
    %v1368 = vpop.f32.mrb[0].mxu0
    %v1369 = vadd.f32 0.0, %v1368
    %v1370 = vpop.f32.mrb[0].mxu0
    %v1371 = vadd.f32 0.0, %v1370
    %1372 = vdwg.mxu0
    %1373 = vmatprep.subr.mxu0 %v578
    %1374 = vmatpush1.msra.mxu0 %v577
    %1375 = vmatprep.subr.mxu0 %v582
    %1376 = vmatpush1.msra.mxu0 %v581
    %1377 = vmatprep.subr.mxu0 %v586
    %1378 = vmatpush1.msra.mxu0 %v585
    %1379 = vmatprep.subr.mxu0 %v590
    %1380 = vmatpush1.msra.mxu0 %v589
    %1381 = vmatprep.subr.mxu0 %v594
    %1382 = vmatpush1.msra.mxu0 %v593
    %1383 = vmatprep.subr.mxu0 %v598
    %1384 = vmatpush1.msra.mxu0 %v597
    %1385 = vmatprep.subr.mxu0 %v602
    %1386 = vmatpush1.msra.mxu0 %v601
    %1387 = vmatprep.subr.mxu0 %v606
    %1388 = vmatpush1.msra.mxu0 %v605
    %1389 = vmatprep.subr.mxu0 %v610
    %1390 = vmatpush1.msra.mxu0 %v609
    %1391 = vmatprep.subr.mxu0 %v614
    %1392 = vmatpush1.msra.mxu0 %v613
    %1393 = vmatprep.subr.mxu0 %v618
    %1394 = vmatpush1.msra.mxu0 %v617
    %1395 = vmatprep.subr.mxu0 %v622
    %1396 = vmatpush1.msra.mxu0 %v621
    %1397 = vmatprep.subr.mxu0 %v626
    %1398 = vmatpush1.msra.mxu0 %v625
    %1399 = vmatprep.subr.mxu0 %v630
    %1400 = vmatpush1.msra.mxu0 %v629
    %1401 = vmatprep.subr.mxu0 %v634
    %1402 = vmatpush1.msra.mxu0 %v633
    %1403 = vmatprep.subr.mxu0 %v638
    %1404 = vmatpush1.msra.mxu0 %v637
    %1405 = vmatprep.subr.mxu0 0.0
    %1406 = vmatpush1.msra.mxu0 0.0
    %1407 = vmatprep.subr.mxu0 0.0
    %1408 = vmatpush1.msra.mxu0 0.0
    %1409 = vmatprep.subr.mxu0 0.0
    %1410 = vmatpush1.msra.mxu0 0.0
    %1411 = vmatprep.subr.mxu0 0.0
    %1412 = vmatpush1.msra.mxu0 0.0
    %1413 = vmatprep.subr.mxu0 0.0
    %1414 = vmatpush1.msra.mxu0 0.0
    %1415 = vmatprep.subr.mxu0 0.0
    %1416 = vmatpush1.msra.mxu0 0.0
    %1417 = vmatprep.subr.mxu0 0.0
    %1418 = vmatpush1.msra.mxu0 0.0
    %1419 = vmatprep.subr.mxu0 0.0
    %1420 = vmatpush1.msra.mxu0 0.0
    %1421 = vmatprep.subr.mxu0 0.0
    %1422 = vmatpush1.msra.mxu0 0.0
    %1423 = vmatprep.subr.mxu0 0.0
    %1424 = vmatpush1.msra.mxu0 0.0
    %1425 = vmatprep.subr.mxu0 0.0
    %1426 = vmatpush1.msra.mxu0 0.0
    %1427 = vmatprep.subr.mxu0 0.0
    %1428 = vmatpush1.msra.mxu0 0.0
    %1429 = vmatprep.subr.mxu0 0.0
    %1430 = vmatpush1.msra.mxu0 0.0
    %1431 = vmatprep.subr.mxu0 0.0
    %1432 = vmatpush1.msra.mxu0 0.0
    %1433 = vmatprep.subr.mxu0 0.0
    %1434 = vmatpush1.msra.mxu0 0.0
    %1435 = vmatprep.subr.mxu0 0.0
    %1436 = vmatpush1.msra.mxu0 0.0
    %1437 = vmatprep.mubr.f32.mxu0 0.0
    %1438 = vmatmul.mubr.f32.gmra.mrb[0].mxu0 %v1285
    %v1439 = vpop.f32.mrb[0].mxu0
    %v1440 = vadd.f32 0.0, %v1439
    %v1441 = vpop.f32.mrb[0].mxu0
    %v1442 = vadd.f32 0.0, %v1441
    %1443 = vmatprep.mubr.f32.mxu0 0.0
    %1444 = vmatmul.mubr.f32.gmra.mrb[0].mxu0 %v1286
    %v1445 = vpop.f32.mrb[0].mxu0
    %v1446 = vadd.f32 0.0, %v1445
    %v1447 = vpop.f32.mrb[0].mxu0
    %v1448 = vadd.f32 0.0, %v1447
    %1449 = vdwg.mxu0
    %v1450 = vadd.f32 %v1288, %v1363
    %v1451 = vadd.f32 %v1289, %v1365
    %v1452 = vadd.f32 %v1290, %v1440
    %v1453 = vadd.f32 %v1291, %v1442
    %v1454 = vadd.f32 %v1292, %v1369
    %v1455 = vadd.f32 %v1293, %v1371
    %v1456 = vadd.f32 %v1294, %v1446
    %v1457 = vadd.f32 %v1295, %v1448
    %v1458 = vxor.u32 %v1450, 2147483648
    %v1459 = vxor.u32 %v1451, 2147483648
    %v1460 = vxor.u32 %v1452, 2147483648
    %v1461 = vxor.u32 %v1454, 2147483648
    %v1462 = vxor.u32 %v1455, 2147483648
    %v1463 = vxor.u32 %v1456, 2147483648
    %v1464 = vmul.f32 %v1458, 1.442695
    %v1465 = vpow.pop %v1464
    %v1466 = vmul.f32 %v1459, 1.442695
    %v1467 = vpow.pop %v1466
    %v1468 = vmul.f32 %v1460, 1.442695
    %v1469 = vpow.pop %v1468
    %v1470 = vmul.f32 %v1461, 1.442695
    %v1471 = vpow.pop %v1470
    %v1472 = vmul.f32 %v1462, 1.442695
    %v1473 = vpow.pop %v1472
    %v1474 = vmul.f32 %v1463, 1.442695
    %v1475 = vpow.pop %v1474
    %v1476 = vadd.f32 %v1465, 1.0
    %v1477 = vadd.f32 %v1467, 1.0
    %v1478 = vadd.f32 %v1469, 1.0
    %v1479 = vadd.f32 %v1471, 1.0
    %v1480 = vadd.f32 %v1473, 1.0
    %v1481 = vadd.f32 %v1475, 1.0
    %v1482 = vrcp.pop %v1476
    %v1483 = vmul.f32 1.0, %v1482
    %v1484 = vrcp.pop %v1477
    %v1485 = vmul.f32 1.0, %v1484
    %v1486 = vrcp.pop %v1478
    %v1487 = vmul.f32 1.0, %v1486
    %v1488 = vrcp.pop %v1479
    %v1489 = vmul.f32 1.0, %v1488
    %v1490 = vrcp.pop %v1480
    %v1491 = vmul.f32 1.0, %v1490
    %v1492 = vrcp.pop %v1481
    %v1493 = vmul.f32 1.0, %v1492
    %v1494 = vtanh.pop %v1453
    %v1495 = vtanh.pop %v1457
    %v1496 = vmul.f32 %v1485, %v1281
    %v1497 = vmul.f32 %v1491, %v1282
    %v1498 = vmul.f32 %v1483, %v1494
    %v1499 = vmul.f32 %v1489, %v1495
    %v1500 = vadd.f32 %v1496, %v1498
    %v1501 = vadd.f32 %v1497, %v1499
    %v1502 = vtanh.pop %v1500
    %v1503 = vtanh.pop %v1501
    %v1504 = vmul.f32 %v1487, %v1502
    %v1505 = vmul.f32 %v1493, %v1503
    %s1506 = scalar_lea.vmem [#allocation2], 256
    %v1507 = vld [vmem:[%s1506] sm:$0xff]
    %v1508 = vld [vmem:[%s1506 + $0x8] sm:$0xff]
    %v1509 = vld [vmem:[%s1506 + $0x10] sm:$0xff]
    %v1510 = vld [vmem:[%s1506 + $0x18] sm:$0xff]
    %v1511 = vld [vmem:[%s1506 + $0x20] sm:$0xff]
    %v1512 = vld [vmem:[%s1506 + $0x28] sm:$0xff]
    %v1513 = vld [vmem:[%s1506 + $0x30] sm:$0xff]
    %v1514 = vld [vmem:[%s1506 + $0x38] sm:$0xff]
    %1515 = vmatprep.subr.mxu0 %v576
    %1516 = vmatpush1.msra.mxu0 %v575
    %1517 = vmatprep.subr.mxu0 %v580
    %1518 = vmatpush1.msra.mxu0 %v579
    %1519 = vmatprep.subr.mxu0 %v584
    %1520 = vmatpush1.msra.mxu0 %v583
    %1521 = vmatprep.subr.mxu0 %v588
    %1522 = vmatpush1.msra.mxu0 %v587
    %1523 = vmatprep.subr.mxu0 %v592
    %1524 = vmatpush1.msra.mxu0 %v591
    %1525 = vmatprep.subr.mxu0 %v596
    %1526 = vmatpush1.msra.mxu0 %v595
    %1527 = vmatprep.subr.mxu0 %v600
    %1528 = vmatpush1.msra.mxu0 %v599
    %1529 = vmatprep.subr.mxu0 %v604
    %1530 = vmatpush1.msra.mxu0 %v603
    %1531 = vmatprep.subr.mxu0 %v608
    %1532 = vmatpush1.msra.mxu0 %v607
    %1533 = vmatprep.subr.mxu0 %v612
    %1534 = vmatpush1.msra.mxu0 %v611
    %1535 = vmatprep.subr.mxu0 %v616
    %1536 = vmatpush1.msra.mxu0 %v615
    %1537 = vmatprep.subr.mxu0 %v620
    %1538 = vmatpush1.msra.mxu0 %v619
    %1539 = vmatprep.subr.mxu0 %v624
    %1540 = vmatpush1.msra.mxu0 %v623
    %1541 = vmatprep.subr.mxu0 %v628
    %1542 = vmatpush1.msra.mxu0 %v627
    %1543 = vmatprep.subr.mxu0 %v632
    %1544 = vmatpush1.msra.mxu0 %v631
    %1545 = vmatprep.subr.mxu0 %v636
    %1546 = vmatpush1.msra.mxu0 %v635
    %1547 = vmatprep.subr.mxu0 0.0
    %1548 = vmatpush1.msra.mxu0 0.0
    %1549 = vmatprep.subr.mxu0 0.0
    %1550 = vmatpush1.msra.mxu0 0.0
    %1551 = vmatprep.subr.mxu0 0.0
    %1552 = vmatpush1.msra.mxu0 0.0
    %1553 = vmatprep.subr.mxu0 0.0
    %1554 = vmatpush1.msra.mxu0 0.0
    %1555 = vmatprep.subr.mxu0 0.0
    %1556 = vmatpush1.msra.mxu0 0.0
    %1557 = vmatprep.subr.mxu0 0.0
    %1558 = vmatpush1.msra.mxu0 0.0
    %1559 = vmatprep.subr.mxu0 0.0
    %1560 = vmatpush1.msra.mxu0 0.0
    %1561 = vmatprep.subr.mxu0 0.0
    %1562 = vmatpush1.msra.mxu0 0.0
    %1563 = vmatprep.subr.mxu0 0.0
    %1564 = vmatpush1.msra.mxu0 0.0
    %1565 = vmatprep.subr.mxu0 0.0
    %1566 = vmatpush1.msra.mxu0 0.0
    %1567 = vmatprep.subr.mxu0 0.0
    %1568 = vmatpush1.msra.mxu0 0.0
    %1569 = vmatprep.subr.mxu0 0.0
    %1570 = vmatpush1.msra.mxu0 0.0
    %1571 = vmatprep.subr.mxu0 0.0
    %1572 = vmatpush1.msra.mxu0 0.0
    %1573 = vmatprep.subr.mxu0 0.0
    %1574 = vmatpush1.msra.mxu0 0.0
    %1575 = vmatprep.subr.mxu0 0.0
    %1576 = vmatpush1.msra.mxu0 0.0
    %1577 = vmatprep.subr.mxu0 0.0
    %1578 = vmatpush1.msra.mxu0 0.0
    %1579 = vmatprep.mubr.f32.mxu0 0.0
    %1580 = vmatmul.mubr.f32.gmra.mrb[0].mxu0 %v1504
    %v1581 = vpop.f32.mrb[0].mxu0
    %v1582 = vadd.f32 0.0, %v1581
    %v1583 = vpop.f32.mrb[0].mxu0
    %v1584 = vadd.f32 0.0, %v1583
    %1585 = vmatprep.mubr.f32.mxu0 0.0
    %1586 = vmatmul.mubr.f32.gmra.mrb[0].mxu0 %v1505
    %v1587 = vpop.f32.mrb[0].mxu0
    %v1588 = vadd.f32 0.0, %v1587
    %v1589 = vpop.f32.mrb[0].mxu0
    %v1590 = vadd.f32 0.0, %v1589
    %1591 = vdwg.mxu0
    %1592 = vmatprep.subr.mxu0 %v578
    %1593 = vmatpush1.msra.mxu0 %v577
    %1594 = vmatprep.subr.mxu0 %v582
    %1595 = vmatpush1.msra.mxu0 %v581
    %1596 = vmatprep.subr.mxu0 %v586
    %1597 = vmatpush1.msra.mxu0 %v585
    %1598 = vmatprep.subr.mxu0 %v590
    %1599 = vmatpush1.msra.mxu0 %v589
    %1600 = vmatprep.subr.mxu0 %v594
    %1601 = vmatpush1.msra.mxu0 %v593
    %1602 = vmatprep.subr.mxu0 %v598
    %1603 = vmatpush1.msra.mxu0 %v597
    %1604 = vmatprep.subr.mxu0 %v602
    %1605 = vmatpush1.msra.mxu0 %v601
    %1606 = vmatprep.subr.mxu0 %v606
    %1607 = vmatpush1.msra.mxu0 %v605
    %1608 = vmatprep.subr.mxu0 %v610
    %1609 = vmatpush1.msra.mxu0 %v609
    %1610 = vmatprep.subr.mxu0 %v614
    %1611 = vmatpush1.msra.mxu0 %v613
    %1612 = vmatprep.subr.mxu0 %v618
    %1613 = vmatpush1.msra.mxu0 %v617
    %1614 = vmatprep.subr.mxu0 %v622
    %1615 = vmatpush1.msra.mxu0 %v621
    %1616 = vmatprep.subr.mxu0 %v626
    %1617 = vmatpush1.msra.mxu0 %v625
    %1618 = vmatprep.subr.mxu0 %v630
    %1619 = vmatpush1.msra.mxu0 %v629
    %1620 = vmatprep.subr.mxu0 %v634
    %1621 = vmatpush1.msra.mxu0 %v633
    %1622 = vmatprep.subr.mxu0 %v638
    %1623 = vmatpush1.msra.mxu0 %v637
    %1624 = vmatprep.subr.mxu0 0.0
    %1625 = vmatpush1.msra.mxu0 0.0
    %1626 = vmatprep.subr.mxu0 0.0
    %1627 = vmatpush1.msra.mxu0 0.0
    %1628 = vmatprep.subr.mxu0 0.0
    %1629 = vmatpush1.msra.mxu0 0.0
    %1630 = vmatprep.subr.mxu0 0.0
    %1631 = vmatpush1.msra.mxu0 0.0
    %1632 = vmatprep.subr.mxu0 0.0
    %1633 = vmatpush1.msra.mxu0 0.0
    %1634 = vmatprep.subr.mxu0 0.0
    %1635 = vmatpush1.msra.mxu0 0.0
    %1636 = vmatprep.subr.mxu0 0.0
    %1637 = vmatpush1.msra.mxu0 0.0
    %1638 = vmatprep.subr.mxu0 0.0
    %1639 = vmatpush1.msra.mxu0 0.0
    %1640 = vmatprep.subr.mxu0 0.0
    %1641 = vmatpush1.msra.mxu0 0.0
    %1642 = vmatprep.subr.mxu0 0.0
    %1643 = vmatpush1.msra.mxu0 0.0
    %1644 = vmatprep.subr.mxu0 0.0
    %1645 = vmatpush1.msra.mxu0 0.0
    %1646 = vmatprep.subr.mxu0 0.0
    %1647 = vmatpush1.msra.mxu0 0.0
    %1648 = vmatprep.subr.mxu0 0.0
    %1649 = vmatpush1.msra.mxu0 0.0
    %1650 = vmatprep.subr.mxu0 0.0
    %1651 = vmatpush1.msra.mxu0 0.0
    %1652 = vmatprep.subr.mxu0 0.0
    %1653 = vmatpush1.msra.mxu0 0.0
    %1654 = vmatprep.subr.mxu0 0.0
    %1655 = vmatpush1.msra.mxu0 0.0
    %1656 = vmatprep.mubr.f32.mxu0 0.0
    %1657 = vmatmul.mubr.f32.gmra.mrb[0].mxu0 %v1504
    %v1658 = vpop.f32.mrb[0].mxu0
    %v1659 = vadd.f32 0.0, %v1658
    %v1660 = vpop.f32.mrb[0].mxu0
    %v1661 = vadd.f32 0.0, %v1660
    %1662 = vmatprep.mubr.f32.mxu0 0.0
    %1663 = vmatmul.mubr.f32.gmra.mrb[0].mxu0 %v1505
    %v1664 = vpop.f32.mrb[0].mxu0
    %v1665 = vadd.f32 0.0, %v1664
    %v1666 = vpop.f32.mrb[0].mxu0
    %v1667 = vadd.f32 0.0, %v1666
    %1668 = vdwg.mxu0
    %v1669 = vadd.f32 %v1507, %v1582
    %v1670 = vadd.f32 %v1508, %v1584
    %v1671 = vadd.f32 %v1509, %v1659
    %v1672 = vadd.f32 %v1510, %v1661
    %v1673 = vadd.f32 %v1511, %v1588
    %v1674 = vadd.f32 %v1512, %v1590
    %v1675 = vadd.f32 %v1513, %v1665
    %v1676 = vadd.f32 %v1514, %v1667
    %v1677 = vxor.u32 %v1669, 2147483648
    %v1678 = vxor.u32 %v1670, 2147483648
    %v1679 = vxor.u32 %v1671, 2147483648
    %v1680 = vxor.u32 %v1673, 2147483648
    %v1681 = vxor.u32 %v1674, 2147483648
    %v1682 = vxor.u32 %v1675, 2147483648
    %v1683 = vmul.f32 %v1677, 1.442695
    %v1684 = vpow.pop %v1683
    %v1685 = vmul.f32 %v1678, 1.442695
    %v1686 = vpow.pop %v1685
    %v1687 = vmul.f32 %v1679, 1.442695
    %v1688 = vpow.pop %v1687
    %v1689 = vmul.f32 %v1680, 1.442695
    %v1690 = vpow.pop %v1689
    %v1691 = vmul.f32 %v1681, 1.442695
    %v1692 = vpow.pop %v1691
    %v1693 = vmul.f32 %v1682, 1.442695
    %v1694 = vpow.pop %v1693
    %v1695 = vadd.f32 %v1684, 1.0
    %v1696 = vadd.f32 %v1686, 1.0
    %v1697 = vadd.f32 %v1688, 1.0
    %v1698 = vadd.f32 %v1690, 1.0
    %v1699 = vadd.f32 %v1692, 1.0
    %v1700 = vadd.f32 %v1694, 1.0
    %v1701 = vrcp.pop %v1695
    %v1702 = vmul.f32 1.0, %v1701
    %v1703 = vrcp.pop %v1696
    %v1704 = vmul.f32 1.0, %v1703
    %v1705 = vrcp.pop %v1697
    %v1706 = vmul.f32 1.0, %v1705
    %v1707 = vrcp.pop %v1698
    %v1708 = vmul.f32 1.0, %v1707
    %v1709 = vrcp.pop %v1699
    %v1710 = vmul.f32 1.0, %v1709
    %v1711 = vrcp.pop %v1700
    %v1712 = vmul.f32 1.0, %v1711
    %v1713 = vtanh.pop %v1672
    %v1714 = vtanh.pop %v1676
    %v1715 = vmul.f32 %v1704, %v1500
    %v1716 = vmul.f32 %v1710, %v1501
    %v1717 = vmul.f32 %v1702, %v1713
    %v1718 = vmul.f32 %v1708, %v1714
    %v1719 = vadd.f32 %v1715, %v1717
    %v1720 = vadd.f32 %v1716, %v1718
    %v1721 = vtanh.pop %v1719
    %v1722 = vtanh.pop %v1720
    %v1723 = vmul.f32 %v1706, %v1721
    %v1724 = vmul.f32 %v1712, %v1722
    %s1725 = scalar_lea.vmem [#allocation2], 320
    %v1726 = vld [vmem:[%s1725] sm:$0xff]
    %v1727 = vld [vmem:[%s1725 + $0x8] sm:$0xff]
    %v1728 = vld [vmem:[%s1725 + $0x10] sm:$0xff]
    %v1729 = vld [vmem:[%s1725 + $0x18] sm:$0xff]
    %v1730 = vld [vmem:[%s1725 + $0x20] sm:$0xff]
    %v1731 = vld [vmem:[%s1725 + $0x28] sm:$0xff]
    %v1732 = vld [vmem:[%s1725 + $0x30] sm:$0xff]
    %v1733 = vld [vmem:[%s1725 + $0x38] sm:$0xff]
    %1734 = vmatprep.subr.mxu0 %v576
    %1735 = vmatpush1.msra.mxu0 %v575
    %1736 = vmatprep.subr.mxu0 %v580
    %1737 = vmatpush1.msra.mxu0 %v579
    %1738 = vmatprep.subr.mxu0 %v584
    %1739 = vmatpush1.msra.mxu0 %v583
    %1740 = vmatprep.subr.mxu0 %v588
    %1741 = vmatpush1.msra.mxu0 %v587
    %1742 = vmatprep.subr.mxu0 %v592
    %1743 = vmatpush1.msra.mxu0 %v591
    %1744 = vmatprep.subr.mxu0 %v596
    %1745 = vmatpush1.msra.mxu0 %v595
    %1746 = vmatprep.subr.mxu0 %v600
    %1747 = vmatpush1.msra.mxu0 %v599
    %1748 = vmatprep.subr.mxu0 %v604
    %1749 = vmatpush1.msra.mxu0 %v603
    %1750 = vmatprep.subr.mxu0 %v608
    %1751 = vmatpush1.msra.mxu0 %v607
    %1752 = vmatprep.subr.mxu0 %v612
    %1753 = vmatpush1.msra.mxu0 %v611
    %1754 = vmatprep.subr.mxu0 %v616
    %1755 = vmatpush1.msra.mxu0 %v615
    %1756 = vmatprep.subr.mxu0 %v620
    %1757 = vmatpush1.msra.mxu0 %v619
    %1758 = vmatprep.subr.mxu0 %v624
    %1759 = vmatpush1.msra.mxu0 %v623
    %1760 = vmatprep.subr.mxu0 %v628
    %1761 = vmatpush1.msra.mxu0 %v627
    %1762 = vmatprep.subr.mxu0 %v632
    %1763 = vmatpush1.msra.mxu0 %v631
    %1764 = vmatprep.subr.mxu0 %v636
    %1765 = vmatpush1.msra.mxu0 %v635
    %1766 = vmatprep.subr.mxu0 0.0
    %1767 = vmatpush1.msra.mxu0 0.0
    %1768 = vmatprep.subr.mxu0 0.0
    %1769 = vmatpush1.msra.mxu0 0.0
    %1770 = vmatprep.subr.mxu0 0.0
    %1771 = vmatpush1.msra.mxu0 0.0
    %1772 = vmatprep.subr.mxu0 0.0
    %1773 = vmatpush1.msra.mxu0 0.0
    %1774 = vmatprep.subr.mxu0 0.0
    %1775 = vmatpush1.msra.mxu0 0.0
    %1776 = vmatprep.subr.mxu0 0.0
    %1777 = vmatpush1.msra.mxu0 0.0
    %1778 = vmatprep.subr.mxu0 0.0
    %1779 = vmatpush1.msra.mxu0 0.0
    %1780 = vmatprep.subr.mxu0 0.0
    %1781 = vmatpush1.msra.mxu0 0.0
    %1782 = vmatprep.subr.mxu0 0.0
    %1783 = vmatpush1.msra.mxu0 0.0
    %1784 = vmatprep.subr.mxu0 0.0
    %1785 = vmatpush1.msra.mxu0 0.0
    %1786 = vmatprep.subr.mxu0 0.0
    %1787 = vmatpush1.msra.mxu0 0.0
    %1788 = vmatprep.subr.mxu0 0.0
    %1789 = vmatpush1.msra.mxu0 0.0
    %1790 = vmatprep.subr.mxu0 0.0
    %1791 = vmatpush1.msra.mxu0 0.0
    %1792 = vmatprep.subr.mxu0 0.0
    %1793 = vmatpush1.msra.mxu0 0.0
    %1794 = vmatprep.subr.mxu0 0.0
    %1795 = vmatpush1.msra.mxu0 0.0
    %1796 = vmatprep.subr.mxu0 0.0
    %1797 = vmatpush1.msra.mxu0 0.0
    %1798 = vmatprep.mubr.f32.mxu0 0.0
    %1799 = vmatmul.mubr.f32.gmra.mrb[0].mxu0 %v1723
    %v1800 = vpop.f32.mrb[0].mxu0
    %v1801 = vadd.f32 0.0, %v1800
    %v1802 = vpop.f32.mrb[0].mxu0
    %v1803 = vadd.f32 0.0, %v1802
    %1804 = vmatprep.mubr.f32.mxu0 0.0
    %1805 = vmatmul.mubr.f32.gmra.mrb[0].mxu0 %v1724
    %v1806 = vpop.f32.mrb[0].mxu0
    %v1807 = vadd.f32 0.0, %v1806
    %v1808 = vpop.f32.mrb[0].mxu0
    %v1809 = vadd.f32 0.0, %v1808
    %1810 = vdwg.mxu0
    %1811 = vmatprep.subr.mxu0 %v578
    %1812 = vmatpush1.msra.mxu0 %v577
    %1813 = vmatprep.subr.mxu0 %v582
    %1814 = vmatpush1.msra.mxu0 %v581
    %1815 = vmatprep.subr.mxu0 %v586
    %1816 = vmatpush1.msra.mxu0 %v585
    %1817 = vmatprep.subr.mxu0 %v590
    %1818 = vmatpush1.msra.mxu0 %v589
    %1819 = vmatprep.subr.mxu0 %v594
    %1820 = vmatpush1.msra.mxu0 %v593
    %1821 = vmatprep.subr.mxu0 %v598
    %1822 = vmatpush1.msra.mxu0 %v597
    %1823 = vmatprep.subr.mxu0 %v602
    %1824 = vmatpush1.msra.mxu0 %v601
    %1825 = vmatprep.subr.mxu0 %v606
    %1826 = vmatpush1.msra.mxu0 %v605
    %1827 = vmatprep.subr.mxu0 %v610
    %1828 = vmatpush1.msra.mxu0 %v609
    %1829 = vmatprep.subr.mxu0 %v614
    %1830 = vmatpush1.msra.mxu0 %v613
    %1831 = vmatprep.subr.mxu0 %v618
    %1832 = vmatpush1.msra.mxu0 %v617
    %1833 = vmatprep.subr.mxu0 %v622
    %1834 = vmatpush1.msra.mxu0 %v621
    %1835 = vmatprep.subr.mxu0 %v626
    %1836 = vmatpush1.msra.mxu0 %v625
    %1837 = vmatprep.subr.mxu0 %v630
    %1838 = vmatpush1.msra.mxu0 %v629
    %1839 = vmatprep.subr.mxu0 %v634
    %1840 = vmatpush1.msra.mxu0 %v633
    %1841 = vmatprep.subr.mxu0 %v638
    %1842 = vmatpush1.msra.mxu0 %v637
    %1843 = vmatprep.subr.mxu0 0.0
    %1844 = vmatpush1.msra.mxu0 0.0
    %1845 = vmatprep.subr.mxu0 0.0
    %1846 = vmatpush1.msra.mxu0 0.0
    %1847 = vmatprep.subr.mxu0 0.0
    %1848 = vmatpush1.msra.mxu0 0.0
    %1849 = vmatprep.subr.mxu0 0.0
    %1850 = vmatpush1.msra.mxu0 0.0
    %1851 = vmatprep.subr.mxu0 0.0
    %1852 = vmatpush1.msra.mxu0 0.0
    %1853 = vmatprep.subr.mxu0 0.0
    %1854 = vmatpush1.msra.mxu0 0.0
    %1855 = vmatprep.subr.mxu0 0.0
    %1856 = vmatpush1.msra.mxu0 0.0
    %1857 = vmatprep.subr.mxu0 0.0
    %1858 = vmatpush1.msra.mxu0 0.0
    %1859 = vmatprep.subr.mxu0 0.0
    %1860 = vmatpush1.msra.mxu0 0.0
    %1861 = vmatprep.subr.mxu0 0.0
    %1862 = vmatpush1.msra.mxu0 0.0
    %1863 = vmatprep.subr.mxu0 0.0
    %1864 = vmatpush1.msra.mxu0 0.0
    %1865 = vmatprep.subr.mxu0 0.0
    %1866 = vmatpush1.msra.mxu0 0.0
    %1867 = vmatprep.subr.mxu0 0.0
    %1868 = vmatpush1.msra.mxu0 0.0
    %1869 = vmatprep.subr.mxu0 0.0
    %1870 = vmatpush1.msra.mxu0 0.0
    %1871 = vmatprep.subr.mxu0 0.0
    %1872 = vmatpush1.msra.mxu0 0.0
    %1873 = vmatprep.subr.mxu0 0.0
    %1874 = vmatpush1.msra.mxu0 0.0
    %1875 = vmatprep.mubr.f32.mxu0 0.0
    %1876 = vmatmul.mubr.f32.gmra.mrb[0].mxu0 %v1723
    %v1877 = vpop.f32.mrb[0].mxu0
    %v1878 = vadd.f32 0.0, %v1877
    %v1879 = vpop.f32.mrb[0].mxu0
    %v1880 = vadd.f32 0.0, %v1879
    %1881 = vmatprep.mubr.f32.mxu0 0.0
    %1882 = vmatmul.mubr.f32.gmra.mrb[0].mxu0 %v1724
    %v1883 = vpop.f32.mrb[0].mxu0
    %v1884 = vadd.f32 0.0, %v1883
    %v1885 = vpop.f32.mrb[0].mxu0
    %v1886 = vadd.f32 0.0, %v1885
    %1887 = vdwg.mxu0
    %v1888 = vadd.f32 %v1726, %v1801
    %v1889 = vadd.f32 %v1727, %v1803
    %v1890 = vadd.f32 %v1728, %v1878
    %v1891 = vadd.f32 %v1729, %v1880
    %v1892 = vadd.f32 %v1730, %v1807
    %v1893 = vadd.f32 %v1731, %v1809
    %v1894 = vadd.f32 %v1732, %v1884
    %v1895 = vadd.f32 %v1733, %v1886
    %v1896 = vxor.u32 %v1888, 2147483648
    %v1897 = vxor.u32 %v1889, 2147483648
    %v1898 = vxor.u32 %v1890, 2147483648
    %v1899 = vxor.u32 %v1892, 2147483648
    %v1900 = vxor.u32 %v1893, 2147483648
    %v1901 = vxor.u32 %v1894, 2147483648
    %v1902 = vmul.f32 %v1896, 1.442695
    %v1903 = vpow.pop %v1902
    %v1904 = vmul.f32 %v1897, 1.442695
    %v1905 = vpow.pop %v1904
    %v1906 = vmul.f32 %v1898, 1.442695
    %v1907 = vpow.pop %v1906
    %v1908 = vmul.f32 %v1899, 1.442695
    %v1909 = vpow.pop %v1908
    %v1910 = vmul.f32 %v1900, 1.442695
    %v1911 = vpow.pop %v1910
    %v1912 = vmul.f32 %v1901, 1.442695
    %v1913 = vpow.pop %v1912
    %v1914 = vadd.f32 %v1903, 1.0
    %v1915 = vadd.f32 %v1905, 1.0
    %v1916 = vadd.f32 %v1907, 1.0
    %v1917 = vadd.f32 %v1909, 1.0
    %v1918 = vadd.f32 %v1911, 1.0
    %v1919 = vadd.f32 %v1913, 1.0
    %v1920 = vrcp.pop %v1914
    %v1921 = vmul.f32 1.0, %v1920
    %v1922 = vrcp.pop %v1915
    %v1923 = vmul.f32 1.0, %v1922
    %v1924 = vrcp.pop %v1916
    %v1925 = vmul.f32 1.0, %v1924
    %v1926 = vrcp.pop %v1917
    %v1927 = vmul.f32 1.0, %v1926
    %v1928 = vrcp.pop %v1918
    %v1929 = vmul.f32 1.0, %v1928
    %v1930 = vrcp.pop %v1919
    %v1931 = vmul.f32 1.0, %v1930
    %v1932 = vtanh.pop %v1891
    %v1933 = vtanh.pop %v1895
    %v1934 = vmul.f32 %v1923, %v1719
    %v1935 = vmul.f32 %v1929, %v1720
    %v1936 = vmul.f32 %v1921, %v1932
    %v1937 = vmul.f32 %v1927, %v1933
    %v1938 = vadd.f32 %v1934, %v1936
    %v1939 = vadd.f32 %v1935, %v1937
    %v1940 = vtanh.pop %v1938
    %v1941 = vtanh.pop %v1939
    %v1942 = vmul.f32 %v1925, %v1940
    %v1943 = vmul.f32 %v1931, %v1941
    %s1944 = scalar_lea.vmem [#allocation2], 384
    %v1945 = vld [vmem:[%s1944] sm:$0xff]
    %v1946 = vld [vmem:[%s1944 + $0x8] sm:$0xff]
    %v1947 = vld [vmem:[%s1944 + $0x10] sm:$0xff]
    %v1948 = vld [vmem:[%s1944 + $0x18] sm:$0xff]
    %v1949 = vld [vmem:[%s1944 + $0x20] sm:$0xff]
    %v1950 = vld [vmem:[%s1944 + $0x28] sm:$0xff]
    %v1951 = vld [vmem:[%s1944 + $0x30] sm:$0xff]
    %v1952 = vld [vmem:[%s1944 + $0x38] sm:$0xff]
    %1953 = vmatprep.subr.mxu0 %v576
    %1954 = vmatpush1.msra.mxu0 %v575
    %1955 = vmatprep.subr.mxu0 %v580
    %1956 = vmatpush1.msra.mxu0 %v579
    %1957 = vmatprep.subr.mxu0 %v584
    %1958 = vmatpush1.msra.mxu0 %v583
    %1959 = vmatprep.subr.mxu0 %v588
    %1960 = vmatpush1.msra.mxu0 %v587
    %1961 = vmatprep.subr.mxu0 %v592
    %1962 = vmatpush1.msra.mxu0 %v591
    %1963 = vmatprep.subr.mxu0 %v596
    %1964 = vmatpush1.msra.mxu0 %v595
    %1965 = vmatprep.subr.mxu0 %v600
    %1966 = vmatpush1.msra.mxu0 %v599
    %1967 = vmatprep.subr.mxu0 %v604
    %1968 = vmatpush1.msra.mxu0 %v603
    %1969 = vmatprep.subr.mxu0 %v608
    %1970 = vmatpush1.msra.mxu0 %v607
    %1971 = vmatprep.subr.mxu0 %v612
    %1972 = vmatpush1.msra.mxu0 %v611
    %1973 = vmatprep.subr.mxu0 %v616
    %1974 = vmatpush1.msra.mxu0 %v615
    %1975 = vmatprep.subr.mxu0 %v620
    %1976 = vmatpush1.msra.mxu0 %v619
    %1977 = vmatprep.subr.mxu0 %v624
    %1978 = vmatpush1.msra.mxu0 %v623
    %1979 = vmatprep.subr.mxu0 %v628
    %1980 = vmatpush1.msra.mxu0 %v627
    %1981 = vmatprep.subr.mxu0 %v632
    %1982 = vmatpush1.msra.mxu0 %v631
    %1983 = vmatprep.subr.mxu0 %v636
    %1984 = vmatpush1.msra.mxu0 %v635
    %1985 = vmatprep.subr.mxu0 0.0
    %1986 = vmatpush1.msra.mxu0 0.0
    %1987 = vmatprep.subr.mxu0 0.0
    %1988 = vmatpush1.msra.mxu0 0.0
    %1989 = vmatprep.subr.mxu0 0.0
    %1990 = vmatpush1.msra.mxu0 0.0
    %1991 = vmatprep.subr.mxu0 0.0
    %1992 = vmatpush1.msra.mxu0 0.0
    %1993 = vmatprep.subr.mxu0 0.0
    %1994 = vmatpush1.msra.mxu0 0.0
    %1995 = vmatprep.subr.mxu0 0.0
    %1996 = vmatpush1.msra.mxu0 0.0
    %1997 = vmatprep.subr.mxu0 0.0
    %1998 = vmatpush1.msra.mxu0 0.0
    %1999 = vmatprep.subr.mxu0 0.0
    %2000 = vmatpush1.msra.mxu0 0.0
    %2001 = vmatprep.subr.mxu0 0.0
    %2002 = vmatpush1.msra.mxu0 0.0
    %2003 = vmatprep.subr.mxu0 0.0
    %2004 = vmatpush1.msra.mxu0 0.0
    %2005 = vmatprep.subr.mxu0 0.0
    %2006 = vmatpush1.msra.mxu0 0.0
    %2007 = vmatprep.subr.mxu0 0.0
    %2008 = vmatpush1.msra.mxu0 0.0
    %2009 = vmatprep.subr.mxu0 0.0
    %2010 = vmatpush1.msra.mxu0 0.0
    %2011 = vmatprep.subr.mxu0 0.0
    %2012 = vmatpush1.msra.mxu0 0.0
    %2013 = vmatprep.subr.mxu0 0.0
    %2014 = vmatpush1.msra.mxu0 0.0
    %2015 = vmatprep.subr.mxu0 0.0
    %2016 = vmatpush1.msra.mxu0 0.0
    %2017 = vmatprep.mubr.f32.mxu0 0.0
    %2018 = vmatmul.mubr.f32.gmra.mrb[0].mxu0 %v1942
    %v2019 = vpop.f32.mrb[0].mxu0
    %v2020 = vadd.f32 0.0, %v2019
    %v2021 = vpop.f32.mrb[0].mxu0
    %v2022 = vadd.f32 0.0, %v2021
    %2023 = vmatprep.mubr.f32.mxu0 0.0
    %2024 = vmatmul.mubr.f32.gmra.mrb[0].mxu0 %v1943
    %v2025 = vpop.f32.mrb[0].mxu0
    %v2026 = vadd.f32 0.0, %v2025
    %v2027 = vpop.f32.mrb[0].mxu0
    %v2028 = vadd.f32 0.0, %v2027
    %2029 = vdwg.mxu0
    %2030 = vmatprep.subr.mxu0 %v578
    %2031 = vmatpush1.msra.mxu0 %v577
    %2032 = vmatprep.subr.mxu0 %v582
    %2033 = vmatpush1.msra.mxu0 %v581
    %2034 = vmatprep.subr.mxu0 %v586
    %2035 = vmatpush1.msra.mxu0 %v585
    %2036 = vmatprep.subr.mxu0 %v590
    %2037 = vmatpush1.msra.mxu0 %v589
    %2038 = vmatprep.subr.mxu0 %v594
    %2039 = vmatpush1.msra.mxu0 %v593
    %2040 = vmatprep.subr.mxu0 %v598
    %2041 = vmatpush1.msra.mxu0 %v597
    %2042 = vmatprep.subr.mxu0 %v602
    %2043 = vmatpush1.msra.mxu0 %v601
    %2044 = vmatprep.subr.mxu0 %v606
    %2045 = vmatpush1.msra.mxu0 %v605
    %2046 = vmatprep.subr.mxu0 %v610
    %2047 = vmatpush1.msra.mxu0 %v609
    %2048 = vmatprep.subr.mxu0 %v614
    %2049 = vmatpush1.msra.mxu0 %v613
    %2050 = vmatprep.subr.mxu0 %v618
    %2051 = vmatpush1.msra.mxu0 %v617
    %2052 = vmatprep.subr.mxu0 %v622
    %2053 = vmatpush1.msra.mxu0 %v621
    %2054 = vmatprep.subr.mxu0 %v626
    %2055 = vmatpush1.msra.mxu0 %v625
    %2056 = vmatprep.subr.mxu0 %v630
    %2057 = vmatpush1.msra.mxu0 %v629
    %2058 = vmatprep.subr.mxu0 %v634
    %2059 = vmatpush1.msra.mxu0 %v633
    %2060 = vmatprep.subr.mxu0 %v638
    %2061 = vmatpush1.msra.mxu0 %v637
    %2062 = vmatprep.subr.mxu0 0.0
    %2063 = vmatpush1.msra.mxu0 0.0
    %2064 = vmatprep.subr.mxu0 0.0
    %2065 = vmatpush1.msra.mxu0 0.0
    %2066 = vmatprep.subr.mxu0 0.0
    %2067 = vmatpush1.msra.mxu0 0.0
    %2068 = vmatprep.subr.mxu0 0.0
    %2069 = vmatpush1.msra.mxu0 0.0
    %2070 = vmatprep.subr.mxu0 0.0
    %2071 = vmatpush1.msra.mxu0 0.0
    %2072 = vmatprep.subr.mxu0 0.0
    %2073 = vmatpush1.msra.mxu0 0.0
    %2074 = vmatprep.subr.mxu0 0.0
    %2075 = vmatpush1.msra.mxu0 0.0
    %2076 = vmatprep.subr.mxu0 0.0
    %2077 = vmatpush1.msra.mxu0 0.0
    %2078 = vmatprep.subr.mxu0 0.0
    %2079 = vmatpush1.msra.mxu0 0.0
    %2080 = vmatprep.subr.mxu0 0.0
    %2081 = vmatpush1.msra.mxu0 0.0
    %2082 = vmatprep.subr.mxu0 0.0
    %2083 = vmatpush1.msra.mxu0 0.0
    %2084 = vmatprep.subr.mxu0 0.0
    %2085 = vmatpush1.msra.mxu0 0.0
    %2086 = vmatprep.subr.mxu0 0.0
    %2087 = vmatpush1.msra.mxu0 0.0
    %2088 = vmatprep.subr.mxu0 0.0
    %2089 = vmatpush1.msra.mxu0 0.0
    %2090 = vmatprep.subr.mxu0 0.0
    %2091 = vmatpush1.msra.mxu0 0.0
    %2092 = vmatprep.subr.mxu0 0.0
    %2093 = vmatpush1.msra.mxu0 0.0
    %2094 = vmatprep.mubr.f32.mxu0 0.0
    %2095 = vmatmul.mubr.f32.gmra.mrb[0].mxu0 %v1942
    %v2096 = vpop.f32.mrb[0].mxu0
    %v2097 = vadd.f32 0.0, %v2096
    %v2098 = vpop.f32.mrb[0].mxu0
    %v2099 = vadd.f32 0.0, %v2098
    %2100 = vmatprep.mubr.f32.mxu0 0.0
    %2101 = vmatmul.mubr.f32.gmra.mrb[0].mxu0 %v1943
    %v2102 = vpop.f32.mrb[0].mxu0
    %v2103 = vadd.f32 0.0, %v2102
    %v2104 = vpop.f32.mrb[0].mxu0
    %v2105 = vadd.f32 0.0, %v2104
    %2106 = vdwg.mxu0
    %v2107 = vadd.f32 %v1945, %v2020
    %v2108 = vadd.f32 %v1946, %v2022
    %v2109 = vadd.f32 %v1947, %v2097
    %v2110 = vadd.f32 %v1948, %v2099
    %v2111 = vadd.f32 %v1949, %v2026
    %v2112 = vadd.f32 %v1950, %v2028
    %v2113 = vadd.f32 %v1951, %v2103
    %v2114 = vadd.f32 %v1952, %v2105
    %v2115 = vxor.u32 %v2107, 2147483648
    %v2116 = vxor.u32 %v2108, 2147483648
    %v2117 = vxor.u32 %v2109, 2147483648
    %v2118 = vxor.u32 %v2111, 2147483648
    %v2119 = vxor.u32 %v2112, 2147483648
    %v2120 = vxor.u32 %v2113, 2147483648
    %v2121 = vmul.f32 %v2115, 1.442695
    %v2122 = vpow.pop %v2121
    %v2123 = vmul.f32 %v2116, 1.442695
    %v2124 = vpow.pop %v2123
    %v2125 = vmul.f32 %v2117, 1.442695
    %v2126 = vpow.pop %v2125
    %v2127 = vmul.f32 %v2118, 1.442695
    %v2128 = vpow.pop %v2127
    %v2129 = vmul.f32 %v2119, 1.442695
    %v2130 = vpow.pop %v2129
    %v2131 = vmul.f32 %v2120, 1.442695
    %v2132 = vpow.pop %v2131
    %v2133 = vadd.f32 %v2122, 1.0
    %v2134 = vadd.f32 %v2124, 1.0
    %v2135 = vadd.f32 %v2126, 1.0
    %v2136 = vadd.f32 %v2128, 1.0
    %v2137 = vadd.f32 %v2130, 1.0
    %v2138 = vadd.f32 %v2132, 1.0
    %v2139 = vrcp.pop %v2133
    %v2140 = vmul.f32 1.0, %v2139
    %v2141 = vrcp.pop %v2134
    %v2142 = vmul.f32 1.0, %v2141
    %v2143 = vrcp.pop %v2135
    %v2144 = vmul.f32 1.0, %v2143
    %v2145 = vrcp.pop %v2136
    %v2146 = vmul.f32 1.0, %v2145
    %v2147 = vrcp.pop %v2137
    %v2148 = vmul.f32 1.0, %v2147
    %v2149 = vrcp.pop %v2138
    %v2150 = vmul.f32 1.0, %v2149
    %v2151 = vtanh.pop %v2110
    %v2152 = vtanh.pop %v2114
    %v2153 = vmul.f32 %v2142, %v1938
    %v2154 = vmul.f32 %v2148, %v1939
    %v2155 = vmul.f32 %v2140, %v2151
    %v2156 = vmul.f32 %v2146, %v2152
    %v2157 = vadd.f32 %v2153, %v2155
    %v2158 = vadd.f32 %v2154, %v2156
    %v2159 = vtanh.pop %v2157
    %v2160 = vtanh.pop %v2158
    %v2161 = vmul.f32 %v2144, %v2159
    %v2162 = vmul.f32 %v2150, %v2160
    %s2163 = scalar_lea.vmem [#allocation2], 448
    %v2164 = vld [vmem:[%s2163] sm:$0xff]
    %v2165 = vld [vmem:[%s2163 + $0x8] sm:$0xff]
    %v2166 = vld [vmem:[%s2163 + $0x10] sm:$0xff]
    %v2167 = vld [vmem:[%s2163 + $0x18] sm:$0xff]
    %v2168 = vld [vmem:[%s2163 + $0x20] sm:$0xff]
    %v2169 = vld [vmem:[%s2163 + $0x28] sm:$0xff]
    %v2170 = vld [vmem:[%s2163 + $0x30] sm:$0xff]
    %v2171 = vld [vmem:[%s2163 + $0x38] sm:$0xff]
    %2172 = vmatprep.subr.mxu0 %v576
    %2173 = vmatpush1.msra.mxu0 %v575
    %2174 = vmatprep.subr.mxu0 %v580
    %2175 = vmatpush1.msra.mxu0 %v579
    %2176 = vmatprep.subr.mxu0 %v584
    %2177 = vmatpush1.msra.mxu0 %v583
    %2178 = vmatprep.subr.mxu0 %v588
    %2179 = vmatpush1.msra.mxu0 %v587
    %2180 = vmatprep.subr.mxu0 %v592
    %2181 = vmatpush1.msra.mxu0 %v591
    %2182 = vmatprep.subr.mxu0 %v596
    %2183 = vmatpush1.msra.mxu0 %v595
    %2184 = vmatprep.subr.mxu0 %v600
    %2185 = vmatpush1.msra.mxu0 %v599
    %2186 = vmatprep.subr.mxu0 %v604
    %2187 = vmatpush1.msra.mxu0 %v603
    %2188 = vmatprep.subr.mxu0 %v608
    %2189 = vmatpush1.msra.mxu0 %v607
    %2190 = vmatprep.subr.mxu0 %v612
    %2191 = vmatpush1.msra.mxu0 %v611
    %2192 = vmatprep.subr.mxu0 %v616
    %2193 = vmatpush1.msra.mxu0 %v615
    %2194 = vmatprep.subr.mxu0 %v620
    %2195 = vmatpush1.msra.mxu0 %v619
    %2196 = vmatprep.subr.mxu0 %v624
    %2197 = vmatpush1.msra.mxu0 %v623
    %2198 = vmatprep.subr.mxu0 %v628
    %2199 = vmatpush1.msra.mxu0 %v627
    %2200 = vmatprep.subr.mxu0 %v632
    %2201 = vmatpush1.msra.mxu0 %v631
    %2202 = vmatprep.subr.mxu0 %v636
    %2203 = vmatpush1.msra.mxu0 %v635
    %2204 = vmatprep.subr.mxu0 0.0
    %2205 = vmatpush1.msra.mxu0 0.0
    %2206 = vmatprep.subr.mxu0 0.0
    %2207 = vmatpush1.msra.mxu0 0.0
    %2208 = vmatprep.subr.mxu0 0.0
    %2209 = vmatpush1.msra.mxu0 0.0
    %2210 = vmatprep.subr.mxu0 0.0
    %2211 = vmatpush1.msra.mxu0 0.0
    %2212 = vmatprep.subr.mxu0 0.0
    %2213 = vmatpush1.msra.mxu0 0.0
    %2214 = vmatprep.subr.mxu0 0.0
    %2215 = vmatpush1.msra.mxu0 0.0
    %2216 = vmatprep.subr.mxu0 0.0
    %2217 = vmatpush1.msra.mxu0 0.0
    %2218 = vmatprep.subr.mxu0 0.0
    %2219 = vmatpush1.msra.mxu0 0.0
    %2220 = vmatprep.subr.mxu0 0.0
    %2221 = vmatpush1.msra.mxu0 0.0
    %2222 = vmatprep.subr.mxu0 0.0
    %2223 = vmatpush1.msra.mxu0 0.0
    %2224 = vmatprep.subr.mxu0 0.0
    %2225 = vmatpush1.msra.mxu0 0.0
    %2226 = vmatprep.subr.mxu0 0.0
    %2227 = vmatpush1.msra.mxu0 0.0
    %2228 = vmatprep.subr.mxu0 0.0
    %2229 = vmatpush1.msra.mxu0 0.0
    %2230 = vmatprep.subr.mxu0 0.0
    %2231 = vmatpush1.msra.mxu0 0.0
    %2232 = vmatprep.subr.mxu0 0.0
    %2233 = vmatpush1.msra.mxu0 0.0
    %2234 = vmatprep.subr.mxu0 0.0
    %2235 = vmatpush1.msra.mxu0 0.0
    %2236 = vmatprep.mubr.f32.mxu0 0.0
    %2237 = vmatmul.mubr.f32.gmra.mrb[0].mxu0 %v2161
    %v2238 = vpop.f32.mrb[0].mxu0
    %v2239 = vadd.f32 0.0, %v2238
    %v2240 = vpop.f32.mrb[0].mxu0
    %v2241 = vadd.f32 0.0, %v2240
    %2242 = vmatprep.mubr.f32.mxu0 0.0
    %2243 = vmatmul.mubr.f32.gmra.mrb[0].mxu0 %v2162
    %v2244 = vpop.f32.mrb[0].mxu0
    %v2245 = vadd.f32 0.0, %v2244
    %v2246 = vpop.f32.mrb[0].mxu0
    %v2247 = vadd.f32 0.0, %v2246
    %2248 = vdwg.mxu0
    %2249 = vmatprep.subr.mxu0 %v578
    %2250 = vmatpush1.msra.mxu0 %v577
    %2251 = vmatprep.subr.mxu0 %v582
    %2252 = vmatpush1.msra.mxu0 %v581
    %2253 = vmatprep.subr.mxu0 %v586
    %2254 = vmatpush1.msra.mxu0 %v585
    %2255 = vmatprep.subr.mxu0 %v590
    %2256 = vmatpush1.msra.mxu0 %v589
    %2257 = vmatprep.subr.mxu0 %v594
    %2258 = vmatpush1.msra.mxu0 %v593
    %2259 = vmatprep.subr.mxu0 %v598
    %2260 = vmatpush1.msra.mxu0 %v597
    %2261 = vmatprep.subr.mxu0 %v602
    %2262 = vmatpush1.msra.mxu0 %v601
    %2263 = vmatprep.subr.mxu0 %v606
    %2264 = vmatpush1.msra.mxu0 %v605
    %2265 = vmatprep.subr.mxu0 %v610
    %2266 = vmatpush1.msra.mxu0 %v609
    %2267 = vmatprep.subr.mxu0 %v614
    %2268 = vmatpush1.msra.mxu0 %v613
    %2269 = vmatprep.subr.mxu0 %v618
    %2270 = vmatpush1.msra.mxu0 %v617
    %2271 = vmatprep.subr.mxu0 %v622
    %2272 = vmatpush1.msra.mxu0 %v621
    %2273 = vmatprep.subr.mxu0 %v626
    %2274 = vmatpush1.msra.mxu0 %v625
    %2275 = vmatprep.subr.mxu0 %v630
    %2276 = vmatpush1.msra.mxu0 %v629
    %2277 = vmatprep.subr.mxu0 %v634
    %2278 = vmatpush1.msra.mxu0 %v633
    %2279 = vmatprep.subr.mxu0 %v638
    %2280 = vmatpush1.msra.mxu0 %v637
    %2281 = vmatprep.subr.mxu0 0.0
    %2282 = vmatpush1.msra.mxu0 0.0
    %2283 = vmatprep.subr.mxu0 0.0
    %2284 = vmatpush1.msra.mxu0 0.0
    %2285 = vmatprep.subr.mxu0 0.0
    %2286 = vmatpush1.msra.mxu0 0.0
    %2287 = vmatprep.subr.mxu0 0.0
    %2288 = vmatpush1.msra.mxu0 0.0
    %2289 = vmatprep.subr.mxu0 0.0
    %2290 = vmatpush1.msra.mxu0 0.0
    %2291 = vmatprep.subr.mxu0 0.0
    %2292 = vmatpush1.msra.mxu0 0.0
    %2293 = vmatprep.subr.mxu0 0.0
    %2294 = vmatpush1.msra.mxu0 0.0
    %2295 = vmatprep.subr.mxu0 0.0
    %2296 = vmatpush1.msra.mxu0 0.0
    %2297 = vmatprep.subr.mxu0 0.0
    %2298 = vmatpush1.msra.mxu0 0.0
    %2299 = vmatprep.subr.mxu0 0.0
    %2300 = vmatpush1.msra.mxu0 0.0
    %2301 = vmatprep.subr.mxu0 0.0
    %2302 = vmatpush1.msra.mxu0 0.0
    %2303 = vmatprep.subr.mxu0 0.0
    %2304 = vmatpush1.msra.mxu0 0.0
    %2305 = vmatprep.subr.mxu0 0.0
    %2306 = vmatpush1.msra.mxu0 0.0
    %2307 = vmatprep.subr.mxu0 0.0
    %2308 = vmatpush1.msra.mxu0 0.0
    %2309 = vmatprep.subr.mxu0 0.0
    %2310 = vmatpush1.msra.mxu0 0.0
    %2311 = vmatprep.subr.mxu0 0.0
    %2312 = vmatpush1.msra.mxu0 0.0
    %2313 = vmatprep.mubr.f32.mxu0 0.0
    %2314 = vmatmul.mubr.f32.gmra.mrb[0].mxu0 %v2161
    %v2315 = vpop.f32.mrb[0].mxu0
    %v2316 = vadd.f32 0.0, %v2315
    %v2317 = vpop.f32.mrb[0].mxu0
    %v2318 = vadd.f32 0.0, %v2317
    %2319 = vmatprep.mubr.f32.mxu0 0.0
    %2320 = vmatmul.mubr.f32.gmra.mrb[0].mxu0 %v2162
    %v2321 = vpop.f32.mrb[0].mxu0
    %v2322 = vadd.f32 0.0, %v2321
    %v2323 = vpop.f32.mrb[0].mxu0
    %v2324 = vadd.f32 0.0, %v2323
    %2325 = vdwg.mxu0
    %v2326 = vadd.f32 %v2164, %v2239
    %v2327 = vadd.f32 %v2165, %v2241
    %v2328 = vadd.f32 %v2166, %v2316
    %v2329 = vadd.f32 %v2167, %v2318
    %v2330 = vadd.f32 %v2168, %v2245
    %v2331 = vadd.f32 %v2169, %v2247
    %v2332 = vadd.f32 %v2170, %v2322
    %v2333 = vadd.f32 %v2171, %v2324
    %v2334 = vxor.u32 %v2326, 2147483648
    %v2335 = vxor.u32 %v2327, 2147483648
    %v2336 = vxor.u32 %v2328, 2147483648
    %v2337 = vxor.u32 %v2330, 2147483648
    %v2338 = vxor.u32 %v2331, 2147483648
    %v2339 = vxor.u32 %v2332, 2147483648
    %v2340 = vmul.f32 %v2334, 1.442695
    %v2341 = vpow.pop %v2340
    %v2342 = vmul.f32 %v2335, 1.442695
    %v2343 = vpow.pop %v2342
    %v2344 = vmul.f32 %v2336, 1.442695
    %v2345 = vpow.pop %v2344
    %v2346 = vmul.f32 %v2337, 1.442695
    %v2347 = vpow.pop %v2346
    %v2348 = vmul.f32 %v2338, 1.442695
    %v2349 = vpow.pop %v2348
    %v2350 = vmul.f32 %v2339, 1.442695
    %v2351 = vpow.pop %v2350
    %v2352 = vadd.f32 %v2341, 1.0
    %v2353 = vadd.f32 %v2343, 1.0
    %v2354 = vadd.f32 %v2345, 1.0
    %v2355 = vadd.f32 %v2347, 1.0
    %v2356 = vadd.f32 %v2349, 1.0
    %v2357 = vadd.f32 %v2351, 1.0
    %v2358 = vrcp.pop %v2352
    %v2359 = vmul.f32 1.0, %v2358
    %v2360 = vrcp.pop %v2353
    %v2361 = vmul.f32 1.0, %v2360
    %v2362 = vrcp.pop %v2354
    %v2363 = vmul.f32 1.0, %v2362
    %v2364 = vrcp.pop %v2355
    %v2365 = vmul.f32 1.0, %v2364
    %v2366 = vrcp.pop %v2356
    %v2367 = vmul.f32 1.0, %v2366
    %v2368 = vrcp.pop %v2357
    %v2369 = vmul.f32 1.0, %v2368
    %v2370 = vtanh.pop %v2329
    %v2371 = vtanh.pop %v2333
    %v2372 = vmul.f32 %v2361, %v2157
    %v2373 = vmul.f32 %v2367, %v2158
    %v2374 = vmul.f32 %v2359, %v2370
    %v2375 = vmul.f32 %v2365, %v2371
    %v2376 = vadd.f32 %v2372, %v2374
    %v2377 = vadd.f32 %v2373, %v2375
    %v2378 = vtanh.pop %v2376
    %v2379 = vtanh.pop %v2377
    %v2380 = vmul.f32 %v2363, %v2378
    %v2381 = vmul.f32 %v2369, %v2379
    %v2382 = vld [vmem:[#allocation9] sm:$0xff]
    %v2383 = vld [vmem:[#allocation9 + $0x8] sm:$0xff]
    %v2384 = vld [vmem:[#allocation9 + $0x10] sm:$0xff]
    %v2385 = vld [vmem:[#allocation9 + $0x18] sm:$0xff]
    %v2386 = vld [vmem:[#allocation9 + $0x20] sm:$0xff]
    %v2387 = vld [vmem:[#allocation9 + $0x28] sm:$0xff]
    %v2388 = vld [vmem:[#allocation9 + $0x30] sm:$0xff]
    %v2389 = vld [vmem:[#allocation9 + $0x38] sm:$0xff]
    %v2390 = vld [vmem:[#allocation9 + $0x40] sm:$0xff]
    %v2391 = vld [vmem:[#allocation9 + $0x48] sm:$0xff]
    %v2392 = vld [vmem:[#allocation9 + $0x50] sm:$0xff]
    %v2393 = vld [vmem:[#allocation9 + $0x58] sm:$0xff]
    %v2394 = vld [vmem:[#allocation9 + $0x60] sm:$0xff]
    %v2395 = vld [vmem:[#allocation9 + $0x68] sm:$0xff]
    %v2396 = vld [vmem:[#allocation9 + $0x70] sm:$0xff]
    %v2397 = vld [vmem:[#allocation9 + $0x78] sm:$0xff]
    %v2398 = vld [vmem:[%s5] sm:$0x1]
    %v2400 = vlaneseq
    %v2401 = vshrl.u32 %v2400, 7
    %v2402 = vsub.s32 0, %v2401
    %v2403 = vrot.slane %v2398, %v2402
    %2405 = vmatprep.subr.mxu0 0.0
    %2406 = vmatpush1.msra.mxu0 %v2382
    %2407 = vmatprep.subr.mxu0 0.0
    %2408 = vmatpush1.msra.mxu0 %v2383
    %2409 = vmatprep.subr.mxu0 0.0
    %2410 = vmatpush1.msra.mxu0 %v2384
    %2411 = vmatprep.subr.mxu0 0.0
    %2412 = vmatpush1.msra.mxu0 %v2385
    %2413 = vmatprep.subr.mxu0 0.0
    %2414 = vmatpush1.msra.mxu0 %v2386
    %2415 = vmatprep.subr.mxu0 0.0
    %2416 = vmatpush1.msra.mxu0 %v2387
    %2417 = vmatprep.subr.mxu0 0.0
    %2418 = vmatpush1.msra.mxu0 %v2388
    %2419 = vmatprep.subr.mxu0 0.0
    %2420 = vmatpush1.msra.mxu0 %v2389
    %2421 = vmatprep.subr.mxu0 0.0
    %2422 = vmatpush1.msra.mxu0 %v2390
    %2423 = vmatprep.subr.mxu0 0.0
    %2424 = vmatpush1.msra.mxu0 %v2391
    %2425 = vmatprep.subr.mxu0 0.0
    %2426 = vmatpush1.msra.mxu0 %v2392
    %2427 = vmatprep.subr.mxu0 0.0
    %2428 = vmatpush1.msra.mxu0 %v2393
    %2429 = vmatprep.subr.mxu0 0.0
    %2430 = vmatpush1.msra.mxu0 %v2394
    %2431 = vmatprep.subr.mxu0 0.0
    %2432 = vmatpush1.msra.mxu0 %v2395
    %2433 = vmatprep.subr.mxu0 0.0
    %2434 = vmatpush1.msra.mxu0 %v2396
    %2435 = vmatprep.subr.mxu0 0.0
    %2436 = vmatpush1.msra.mxu0 %v2397
    %2437 = vmatprep.subr.mxu0 0.0
    %2438 = vmatpush1.msra.mxu0 0.0
    %2439 = vmatprep.subr.mxu0 0.0
    %2440 = vmatpush1.msra.mxu0 0.0
    %2441 = vmatprep.subr.mxu0 0.0
    %2442 = vmatpush1.msra.mxu0 0.0
    %2443 = vmatprep.subr.mxu0 0.0
    %2444 = vmatpush1.msra.mxu0 0.0
    %2445 = vmatprep.subr.mxu0 0.0
    %2446 = vmatpush1.msra.mxu0 0.0
    %2447 = vmatprep.subr.mxu0 0.0
    %2448 = vmatpush1.msra.mxu0 0.0
    %2449 = vmatprep.subr.mxu0 0.0
    %2450 = vmatpush1.msra.mxu0 0.0
    %2451 = vmatprep.subr.mxu0 0.0
    %2452 = vmatpush1.msra.mxu0 0.0
    %2453 = vmatprep.subr.mxu0 0.0
    %2454 = vmatpush1.msra.mxu0 0.0
    %2455 = vmatprep.subr.mxu0 0.0
    %2456 = vmatpush1.msra.mxu0 0.0
    %2457 = vmatprep.subr.mxu0 0.0
    %2458 = vmatpush1.msra.mxu0 0.0
    %2459 = vmatprep.subr.mxu0 0.0
    %2460 = vmatpush1.msra.mxu0 0.0
    %2461 = vmatprep.subr.mxu0 0.0
    %2462 = vmatpush1.msra.mxu0 0.0
    %2463 = vmatprep.subr.mxu0 0.0
    %2464 = vmatpush1.msra.mxu0 0.0
    %2465 = vmatprep.subr.mxu0 0.0
    %2466 = vmatpush1.msra.mxu0 0.0
    %2467 = vmatprep.subr.mxu0 0.0
    %2468 = vmatpush1.msra.mxu0 0.0
    %2469 = vmatprep.mubr.f32.mxu0 0.0
    %2470 = vmatmul.mubr.f32.gmra.mrb[0].mxu0 %v2380
    %v2471 = vpop.f32.mrb[0].mxu0
    %v2472 = vadd.f32 %v2403, %v2471
    %v2473 = vpop.f32.mrb[0].mxu0
    %2474 = vmatprep.mubr.f32.mxu0 0.0
    %2475 = vmatmul.mubr.f32.gmra.mrb[0].mxu0 %v2381
    %v2476 = vpop.f32.mrb[0].mxu0
    %v2477 = vadd.f32 %v2403, %v2476
    %v2478 = vpop.f32.mrb[0].mxu0
    %2479 = vdwg.mxu0
    %2480 = vst [vmem:[#allocation11] sm:$0xff] %v2472
    %2481 = vst [vmem:[#allocation11 + $0x8] sm:$0xff] %v2477
    // Predicated region
    $region42: #{tpu_custom_call.1} parent=1 // pred_check
      _
    $region43: #{tpu_custom_call.1} parent=1 // pred_check_branch
      %2483 = sbr.rel (0) target = $region45
    $region44: #{tpu_custom_call.1} parent=1 // pred_region
      %s2485 = ssub.s32 256, 256
      %2486 = vsyncadd [#allocation5], %s2485
      %s2487 = sshll.u32 [#allocation11], 4
      %s2488 = int_to_ptr.vmem [resolvable:$true] %s2487
      %2493 = dma.vmem_to_hbm [thread:$0]  %s2488, 256, %s6, [#allocation5], 128, 128, 8
    $region45: #{tpu_custom_call.1} parent=1 // pred_fallthru
      _
    // Predicated region
    $region46: #{tpu_custom_call.1} parent=1 // pred_check
      _
    $region47: #{tpu_custom_call.1} parent=1 // pred_check_branch
      %2495 = sbr.rel (0) target = $region49
    $region48: #{tpu_custom_call.1} parent=1 // pred_region
      %2496 = dma.done [#allocation5], 256
    $region49: #{tpu_custom_call.1} parent=1 // pred_fallthru
      _
    %2497 = vsyncpa [#allocation4], 1
    %2498 = vsyncpa [#allocation7], 1
    %2499 = vsyncpa [#allocation10], 1
    %2500 = vsyncpa [#allocation5], 1

</llo_original>
